<compile_context>
chip_gen: v6e
topology: v6e:2x2x1
jax: 0.10.0
libtpu: 0.0.40
codegen_flags: <defaults>
</compile_context>

<pallas_src>
import jax
import jax.numpy as jnp
from jax.experimental import pallas as pl
from jax.experimental.pallas import tpu as pltpu

FILTER_SIZES = (3, 5)
KMAX = max(FILTER_SIZES)        # 5-tap frame; the k=3 weight is zero-embedded
PAD = KMAX // 2                 # 'same' conv padding
LANE = 128
SUB = 8


def _round_up(x, m):
    return (x + m - 1) // m * m


def _make_kernel(TB, Sp, E, H2p, HIDp, Cp):
    """Fused encoder + aggregator + classifier for one batch tile of TB rows."""
    rows = TB * Sp

    def kernel(x_ref, mw_ref, wc_ref, bc_ref, wp_ref, bp_ref, wo_ref, bo_ref,
               out_ref):
        # x_ref  : [TB, Sp+2*PAD, E] bf16  padded embeddings ('same' pad baked in)
        # mw_ref : [TB, Sp, 1]       f32   attention_mask / sum(attention_mask)
        # wc_ref : [KMAX, E, H2p]    bf16  fused conv3+conv5 weight (one tap/slice)
        # bc_ref : [1, H2p]          f32
        # wp_ref : [H2p, HIDp]       bf16  encoder projection (lane padded)
        # bp_ref : [1, HIDp]         f32
        # wo_ref : [HIDp, Cp]        bf16  classifier (labels lane padded)
        # bo_ref : [1, Cp]           f32
        # out_ref: [1, TB, Cp]       f32   lane-dense logits

        # ---- TextCNN conv (both filter sizes): in-kernel im2col as KMAX
        #      accumulating MXU matmuls over tap-shifted views (f32 acc). -----
        x = x_ref[...]                                          # [TB, L, E] bf16
        acc = jnp.zeros((rows, H2p), jnp.float32)
        for k in range(KMAX):
            xk = x[:, k:k + Sp, :].reshape(rows, E)             # VMEM-local shift
            acc = acc + jnp.dot(xk, wc_ref[k],
                                preferred_element_type=jnp.float32)
        feat = jnp.maximum(acc + bc_ref[...], 0.0)              # ReLU, [rows, H2p]

        # ---- Aggregator: exact mask-weighted mean (weights pre-divided). ----
        mw = mw_ref[...]                                        # [TB, Sp, 1] f32
        pooled = jnp.sum(feat.reshape(TB, Sp, H2p) * mw, axis=1)    # [TB, H2p]
        msum = jnp.sum(mw, axis=1)                              # [TB, 1] (1 for real rows)

        # ---- Encoder projection + classifier on the pooled features.
        #      (Both linear -> pooling was commuted in front; projection bias
        #       scaled by msum keeps this exactly equivalent.) ---------------
        h = jnp.dot(pooled.astype(wp_ref.dtype), wp_ref[...],
                    preferred_element_type=jnp.float32) + bp_ref[...] * msum
        logits = jnp.dot(h.astype(wo_ref.dtype), wo_ref[...],
                         preferred_element_type=jnp.float32) + bo_ref[...]
        out_ref[...] = logits.reshape(1, TB, Cp)

    return kernel


def cls_model_forward(input_ids, attention_mask, params):
    """Glue (embedding gather, padding, weight fusion) in XLA; hot path in Pallas."""
    B, S = input_ids.shape
    E = params["embedding"].shape[1]
    H = params["conv_w3"].shape[-1]
    HID = params["proj_w"].shape[-1]
    C = params["cls_w"].shape[-1]

    H2p = _round_up(2 * H, LANE)        # fused conv output width (lane aligned)
    HIDp = _round_up(HID, LANE)         # projection width (lane aligned)
    Cp = _round_up(C, LANE)             # padded label count (lane-dense output)
    Sp = _round_up(S, SUB)              # sequence padded to a sublane multiple
    L = Sp + 2 * PAD                    # per-row padded length seen by the kernel

    # ---- VMEM-budgeted batch tile (weights + temporaries included) ----------
    try:
        vmem_cap = int(getattr(pltpu.get_tpu_info(), "vmem_capacity_bytes",
                               64 * 1024 * 1024))
    except Exception:
        vmem_cap = 64 * 1024 * 1024     # v7x-sized default; safe on every gen
    vmem_cap = max(vmem_cap, 32 * 1024 * 1024)
    vmem_limit = min(int(vmem_cap * 0.85), 128 * 1024 * 1024)
    budget = min(int(vmem_cap * 0.70), vmem_limit)

    def _step_bytes(tb):
        rows = tb * Sp
        blocks = 2 * (tb * L * E * 2 + tb * Sp * 4 + tb * Cp * 4)   # dbl-buffered I/O
        weights = 2 * (KMAX * E * H2p * 2 + H2p * HIDp * 2 + HIDp * Cp * 2
                       + (H2p + HIDp + Cp) * 4)                     # resident weights
        inter = rows * (12 * H2p + 12 * E)                          # f32 temporaries
        return blocks + weights + inter

    TB = max(1, min(B, 1024 // max(Sp, 1)))     # target ~1024 token rows / step
    if B >= 2:
        TB = min(TB, -(-B // 2))                # grid >= 2 -> both v7x TCs busy
    while TB > 1 and _step_bytes(TB) > budget:
        TB -= 1
    Bp = _round_up(B, TB)
    grid = Bp // TB

    # ---- XLA glue: bf16 embedding gather, batch/seq/conv padding ------------
    emb_table = params["embedding"].astype(jnp.bfloat16)
    emb = emb_table[input_ids]                                    # [B, S, E] bf16
    x = jnp.pad(emb, ((0, Bp - B), (PAD, PAD + Sp - S), (0, 0)))  # [Bp, L, E]

    mask_f = attention_mask.astype(jnp.float32)                   # [B, S]
    denom = jnp.maximum(jnp.sum(mask_f, axis=1, keepdims=True), 1.0)
    mw = jnp.pad(mask_f / denom, ((0, Bp - B), (0, Sp - S)))[..., None]  # [Bp,Sp,1]

    # ---- fuse conv3 (zero-embedded into the 5-tap frame) + conv5 weights ----
    w3f = jnp.pad(params["conv_w3"], ((1, 1), (0, 0), (0, 0)))    # taps 1..3 of 5
    wc = jnp.concatenate([w3f, params["conv_w5"]], axis=-1)       # [5, E, 2H]
    wc = jnp.pad(wc, ((0, 0), (0, 0), (0, H2p - 2 * H))).astype(jnp.bfloat16)
    bc = jnp.pad(jnp.concatenate([params["conv_b3"], params["conv_b5"]], -1),
                 ((0, 0), (0, H2p - 2 * H))).astype(jnp.float32)

    wp = jnp.pad(params["proj_w"],
                 ((0, H2p - 2 * H), (0, HIDp - HID))).astype(jnp.bfloat16)
    bp = jnp.pad(params["proj_b"], ((0, 0), (0, HIDp - HID))).astype(jnp.float32)
    wo = jnp.pad(params["cls_w"],
                 ((0, HIDp - HID), (0, Cp - C))).astype(jnp.bfloat16)
    bo = jnp.pad(params["cls_b"], ((0, 0), (0, Cp - C))).astype(jnp.float32)

    kernel = _make_kernel(TB, Sp, E, H2p, HIDp, Cp)

    def _run(single_buffer_weights):
        def _const(shape):
            nd = len(shape)
            if single_buffer_weights:
                return pl.BlockSpec(shape, lambda b, _n=nd: (0,) * _n,
                                    pipeline_mode=pl.Buffered(1))
            return pl.BlockSpec(shape, lambda b, _n=nd: (0,) * _n)

        return pl.pallas_call(
            kernel,
            out_shape=jax.ShapeDtypeStruct((grid, TB, Cp), jnp.float32),
            grid=(grid,),
            in_specs=[
                pl.BlockSpec((TB, L, E), lambda b: (b, 0, 0)),    # embeddings
                pl.BlockSpec((TB, Sp, 1), lambda b: (b, 0, 0)),   # mask weights
                _const((KMAX, E, H2p)), _const((1, H2p)),         # fused conv
                _const((H2p, HIDp)), _const((1, HIDp)),           # projection
                _const((HIDp, Cp)), _const((1, Cp)),              # classifier
            ],
            out_specs=pl.BlockSpec((1, TB, Cp), lambda b: (b, 0, 0)),
            compiler_params=pltpu.CompilerParams(
                dimension_semantics=("parallel",),                # megacore / 2 TCs
                vmem_limit_bytes=vmem_limit),
        )(x, mw, wc, bc, wp, bp, wo, bo)

    try:
        out = _run(True)     # weights single-buffered (halved VMEM residency)
    except Exception:        # fall back if Buffered(1) is unsupported
        out = _run(False)

    return out.reshape(Bp, Cp)[:B, :C]


def init_params(key, vocab_size, embed_dim, conv_hidden, hidden_dim, num_labels):
    keys = jax.random.split(key, 8)
    scale = 0.02
    return {
        "embedding": scale * jax.random.normal(keys[0], (vocab_size, embed_dim), jnp.float32),
        "conv_w3": scale * jax.random.normal(keys[1], (3, embed_dim, conv_hidden), jnp.float32),
        "conv_b3": jnp.zeros((1, conv_hidden), jnp.float32),
        "conv_w5": scale * jax.random.normal(keys[2], (5, embed_dim, conv_hidden), jnp.float32),
        "conv_b5": jnp.zeros((1, conv_hidden), jnp.float32),
        "proj_w": scale * jax.random.normal(keys[3], (2 * conv_hidden, hidden_dim), jnp.float32),
        "proj_b": jnp.zeros((1, hidden_dim), jnp.float32),
        "cls_w": scale * jax.random.normal(keys[4], (hidden_dim, num_labels), jnp.float32),
        "cls_b": jnp.zeros((1, num_labels), jnp.float32),
    }


if __name__ == "__main__":
    B, S = 2, 8
    VOCAB, EMBED, CONV_H, HIDDEN, NUM_LABELS = 50, 32, 32, 32, 10

    key = jax.random.PRNGKey(0)
    k_ids, k_params = jax.random.split(key)

    params = init_params(k_params, VOCAB, EMBED, CONV_H, HIDDEN, NUM_LABELS)
    input_ids = jax.random.randint(k_ids, (B, S), 0, VOCAB, dtype=jnp.int32)
    attention_mask = jnp.array(
        [[1, 1, 1, 1, 1, 1, 1, 1],
         [1, 1, 1, 1, 1, 0, 0, 0]], dtype=jnp.int32)

    logits = cls_model_forward(input_ids, attention_mask, params)
    jax.block_until_ready(logits)
    assert logits.shape == (B, NUM_LABELS)
    assert bool(jnp.all(jnp.isfinite(logits)))
    print("KERNEL_OK")
</pallas_src>

<mosaic_0001>
module attributes {stable_mosaic.version = 11 : i64} {
  func.func @kernel(%arg0: i32, %arg1: memref<1x12x32xbf16, #tpu.memory_space<vmem>>, %arg2: memref<1x8x1xf32, #tpu.memory_space<vmem>>, %arg3: memref<5x32x128xbf16, #tpu.memory_space<vmem>>, %arg4: memref<1x128xf32, #tpu.memory_space<vmem>>, %arg5: memref<128x128xbf16, #tpu.memory_space<vmem>>, %arg6: memref<1x128xf32, #tpu.memory_space<vmem>>, %arg7: memref<128x128xbf16, #tpu.memory_space<vmem>>, %arg8: memref<1x128xf32, #tpu.memory_space<vmem>>, %arg9: memref<1x1x128xf32, #tpu.memory_space<vmem>>) attributes {dimension_semantics = [#tpu.dimension_semantics<parallel>], iteration_bounds = array<i64: 2>, scalar_prefetch = 0 : i64, scratch_operands = 0 : i64, tpu.core_type = #tpu.core_type<tc>, window_params = [{transform_indices = @transform_0, window_bounds = array<i64: 1, 12, 32>}, {transform_indices = @transform_1, window_bounds = array<i64: 1, 8, 1>}, {pipeline_mode = #tpu.pipeline_mode<synchronous>, transform_indices = @transform_2, window_bounds = array<i64: 5, 32, 128>}, {pipeline_mode = #tpu.pipeline_mode<synchronous>, transform_indices = @transform_3, window_bounds = array<i64: 1, 128>}, {pipeline_mode = #tpu.pipeline_mode<synchronous>, transform_indices = @transform_4, window_bounds = array<i64: 128, 128>}, {pipeline_mode = #tpu.pipeline_mode<synchronous>, transform_indices = @transform_5, window_bounds = array<i64: 1, 128>}, {pipeline_mode = #tpu.pipeline_mode<synchronous>, transform_indices = @transform_6, window_bounds = array<i64: 128, 128>}, {pipeline_mode = #tpu.pipeline_mode<synchronous>, transform_indices = @transform_7, window_bounds = array<i64: 1, 128>}, {transform_indices = @transform_8, window_bounds = array<i64: 1, 1, 128>}]} {
    %c0 = arith.constant 0 : index
    %c0_0 = arith.constant 0 : index
    %c0_1 = arith.constant 0 : index
    %0 = vector.load %arg1[%c0, %c0_0, %c0_1] : memref<1x12x32xbf16, #tpu.memory_space<vmem>>, vector<1x12x32xbf16>
    %cst = arith.constant 0.000000e+00 : f32
    %1 = vector.broadcast %cst : f32 to vector<8x128xf32>
    %2 = vector.extract_strided_slice %0 {offsets = [0, 0, 0], sizes = [1, 8, 32], strides = [1, 1, 1]} : vector<1x12x32xbf16> to vector<1x8x32xbf16>
    %3 = vector.shape_cast %2 : vector<1x8x32xbf16> to vector<8x32xbf16>
    %c0_2 = arith.constant 0 : index
    %c0_3 = arith.constant 0 : index
    %c0_4 = arith.constant 0 : index
    %4 = vector.load %arg3[%c0_2, %c0_3, %c0_4] : memref<5x32x128xbf16, #tpu.memory_space<vmem>>, vector<1x32x128xbf16>
    %5 = vector.shape_cast %4 : vector<1x32x128xbf16> to vector<32x128xbf16>
    %cst_5 = arith.constant dense<0.000000e+00> : vector<8x128xf32>
    %6 = tpu.matmul %3, %5, %cst_5 {dimension_numbers = #tpu.dot_dimension_numbers<[1], [0], [0], [1], [0, 0, 1, 1], [], []>} : vector<8x32xbf16>, vector<32x128xbf16>, vector<8x128xf32> -> vector<8x128xf32>
    %7 = arith.addf %1, %6 : vector<8x128xf32>
    %8 = vector.extract_strided_slice %0 {offsets = [0, 1, 0], sizes = [1, 8, 32], strides = [1, 1, 1]} : vector<1x12x32xbf16> to vector<1x8x32xbf16>
    %9 = vector.shape_cast %8 : vector<1x8x32xbf16> to vector<8x32xbf16>
    %c1 = arith.constant 1 : index
    %c0_6 = arith.constant 0 : index
    %c0_7 = arith.constant 0 : index
    %10 = vector.load %arg3[%c1, %c0_6, %c0_7] : memref<5x32x128xbf16, #tpu.memory_space<vmem>>, vector<1x32x128xbf16>
    %11 = vector.shape_cast %10 : vector<1x32x128xbf16> to vector<32x128xbf16>
    %cst_8 = arith.constant dense<0.000000e+00> : vector<8x128xf32>
    %12 = tpu.matmul %9, %11, %cst_8 {dimension_numbers = #tpu.dot_dimension_numbers<[1], [0], [0], [1], [0, 0, 1, 1], [], []>} : vector<8x32xbf16>, vector<32x128xbf16>, vector<8x128xf32> -> vector<8x128xf32>
    %13 = arith.addf %7, %12 : vector<8x128xf32>
    %14 = vector.extract_strided_slice %0 {offsets = [0, 2, 0], sizes = [1, 8, 32], strides = [1, 1, 1]} : vector<1x12x32xbf16> to vector<1x8x32xbf16>
    %15 = vector.shape_cast %14 : vector<1x8x32xbf16> to vector<8x32xbf16>
    %c2 = arith.constant 2 : index
    %c0_9 = arith.constant 0 : index
    %c0_10 = arith.constant 0 : index
    %16 = vector.load %arg3[%c2, %c0_9, %c0_10] : memref<5x32x128xbf16, #tpu.memory_space<vmem>>, vector<1x32x128xbf16>
    %17 = vector.shape_cast %16 : vector<1x32x128xbf16> to vector<32x128xbf16>
    %cst_11 = arith.constant dense<0.000000e+00> : vector<8x128xf32>
    %18 = tpu.matmul %15, %17, %cst_11 {dimension_numbers = #tpu.dot_dimension_numbers<[1], [0], [0], [1], [0, 0, 1, 1], [], []>} : vector<8x32xbf16>, vector<32x128xbf16>, vector<8x128xf32> -> vector<8x128xf32>
    %19 = arith.addf %13, %18 : vector<8x128xf32>
    %20 = vector.extract_strided_slice %0 {offsets = [0, 3, 0], sizes = [1, 8, 32], strides = [1, 1, 1]} : vector<1x12x32xbf16> to vector<1x8x32xbf16>
    %21 = vector.shape_cast %20 : vector<1x8x32xbf16> to vector<8x32xbf16>
    %c3 = arith.constant 3 : index
    %c0_12 = arith.constant 0 : index
    %c0_13 = arith.constant 0 : index
    %22 = vector.load %arg3[%c3, %c0_12, %c0_13] : memref<5x32x128xbf16, #tpu.memory_space<vmem>>, vector<1x32x128xbf16>
    %23 = vector.shape_cast %22 : vector<1x32x128xbf16> to vector<32x128xbf16>
    %cst_14 = arith.constant dense<0.000000e+00> : vector<8x128xf32>
    %24 = tpu.matmul %21, %23, %cst_14 {dimension_numbers = #tpu.dot_dimension_numbers<[1], [0], [0], [1], [0, 0, 1, 1], [], []>} : vector<8x32xbf16>, vector<32x128xbf16>, vector<8x128xf32> -> vector<8x128xf32>
    %25 = arith.addf %19, %24 : vector<8x128xf32>
    %26 = vector.extract_strided_slice %0 {offsets = [0, 4, 0], sizes = [1, 8, 32], strides = [1, 1, 1]} : vector<1x12x32xbf16> to vector<1x8x32xbf16>
    %27 = vector.shape_cast %26 : vector<1x8x32xbf16> to vector<8x32xbf16>
    %c4 = arith.constant 4 : index
    %c0_15 = arith.constant 0 : index
    %c0_16 = arith.constant 0 : index
    %28 = vector.load %arg3[%c4, %c0_15, %c0_16] : memref<5x32x128xbf16, #tpu.memory_space<vmem>>, vector<1x32x128xbf16>
    %29 = vector.shape_cast %28 : vector<1x32x128xbf16> to vector<32x128xbf16>
    %cst_17 = arith.constant dense<0.000000e+00> : vector<8x128xf32>
    %30 = tpu.matmul %27, %29, %cst_17 {dimension_numbers = #tpu.dot_dimension_numbers<[1], [0], [0], [1], [0, 0, 1, 1], [], []>} : vector<8x32xbf16>, vector<32x128xbf16>, vector<8x128xf32> -> vector<8x128xf32>
    %31 = arith.addf %25, %30 : vector<8x128xf32>
    %c0_18 = arith.constant 0 : index
    %c0_19 = arith.constant 0 : index
    %32 = vector.load %arg4[%c0_18, %c0_19] : memref<1x128xf32, #tpu.memory_space<vmem>>, vector<1x128xf32>
    %33 = vector.broadcast %32 : vector<1x128xf32> to vector<8x128xf32>
    %34 = arith.addf %31, %33 : vector<8x128xf32>
    %cst_20 = arith.constant 0.000000e+00 : f32
    %35 = vector.broadcast %cst_20 : f32 to vector<8x128xf32>
    %36 = arith.maximumf %34, %35 : vector<8x128xf32>
    %c0_21 = arith.constant 0 : index
    %c0_22 = arith.constant 0 : index
    %c0_23 = arith.constant 0 : index
    %37 = vector.load %arg2[%c0_21, %c0_22, %c0_23] : memref<1x8x1xf32, #tpu.memory_space<vmem>>, vector<1x8x1xf32>
    %38 = vector.shape_cast %36 : vector<8x128xf32> to vector<1x8x128xf32>
    %39 = vector.broadcast %37 : vector<1x8x1xf32> to vector<1x8x128xf32>
    %40 = arith.mulf %38, %39 : vector<1x8x128xf32>
    %cst_24 = arith.constant dense<0.000000e+00> : vector<1x128xf32>
    %41 = vector.multi_reduction <add>, %40, %cst_24 [1] : vector<1x8x128xf32> to vector<1x128xf32>
    %cst_25 = arith.constant dense<0.000000e+00> : vector<1x1xf32>
    %42 = vector.multi_reduction <add>, %37, %cst_25 [1] : vector<1x8x1xf32> to vector<1x1xf32>
    %43 = arith.truncf %41 : vector<1x128xf32> to vector<1x128xbf16>
    %c0_26 = arith.constant 0 : index
    %c0_27 = arith.constant 0 : index
    %44 = vector.load %arg5[%c0_26, %c0_27] : memref<128x128xbf16, #tpu.memory_space<vmem>>, vector<128x128xbf16>
    %cst_28 = arith.constant dense<0.000000e+00> : vector<1x128xf32>
    %45 = tpu.matmul %43, %44, %cst_28 {dimension_numbers = #tpu.dot_dimension_numbers<[1], [0], [0], [1], [0, 0, 1, 1], [], []>} : vector<1x128xbf16>, vector<128x128xbf16>, vector<1x128xf32> -> vector<1x128xf32>
    %c0_29 = arith.constant 0 : index
    %c0_30 = arith.constant 0 : index
    %46 = vector.load %arg6[%c0_29, %c0_30] : memref<1x128xf32, #tpu.memory_space<vmem>>, vector<1x128xf32>
    %47 = vector.broadcast %42 : vector<1x1xf32> to vector<1x128xf32>
    %48 = arith.mulf %46, %47 : vector<1x128xf32>
    %49 = arith.addf %45, %48 : vector<1x128xf32>
    %50 = arith.truncf %49 : vector<1x128xf32> to vector<1x128xbf16>
    %c0_31 = arith.constant 0 : index
    %c0_32 = arith.constant 0 : index
    %51 = vector.load %arg7[%c0_31, %c0_32] : memref<128x128xbf16, #tpu.memory_space<vmem>>, vector<128x128xbf16>
    %cst_33 = arith.constant dense<0.000000e+00> : vector<1x128xf32>
    %52 = tpu.matmul %50, %51, %cst_33 {dimension_numbers = #tpu.dot_dimension_numbers<[1], [0], [0], [1], [0, 0, 1, 1], [], []>} : vector<1x128xbf16>, vector<128x128xbf16>, vector<1x128xf32> -> vector<1x128xf32>
    %c0_34 = arith.constant 0 : index
    %c0_35 = arith.constant 0 : index
    %53 = vector.load %arg8[%c0_34, %c0_35] : memref<1x128xf32, #tpu.memory_space<vmem>>, vector<1x128xf32>
    %54 = arith.addf %52, %53 : vector<1x128xf32>
    %55 = vector.shape_cast %54 : vector<1x128xf32> to vector<1x1x128xf32>
    %c0_36 = arith.constant 0 : index
    %c0_37 = arith.constant 0 : index
    %c0_38 = arith.constant 0 : index
    %56 = vector.load %arg9[%c0_36, %c0_37, %c0_38] : memref<1x1x128xf32, #tpu.memory_space<vmem>>, vector<1x1x128xf32>
    tpu.vector_store %arg9[%c0_36, %c0_37, %c0_38], %55 {strides = array<i32>} : memref<1x1x128xf32, #tpu.memory_space<vmem>>, vector<1x1x128xf32>,
    return
  }
  func.func @transform_0(%arg0: i32) -> (i32, i32, i32) {
    %c0_i32 = arith.constant 0 : i32
    %c0_i32_0 = arith.constant 0 : i32
    %c0_i32_1 = arith.constant 0 : i32
    return %arg0, %c0_i32, %c0_i32_0 : i32, i32, i32
  }
  func.func @transform_1(%arg0: i32) -> (i32, i32, i32) {
    %c0_i32 = arith.constant 0 : i32
    %c0_i32_0 = arith.constant 0 : i32
    %c0_i32_1 = arith.constant 0 : i32
    return %arg0, %c0_i32, %c0_i32_0 : i32, i32, i32
  }
  func.func @transform_2(%arg0: i32) -> (i32, i32, i32) {
    %c0_i32 = arith.constant 0 : i32
    %c0_i32_0 = arith.constant 0 : i32
    %c0_i32_1 = arith.constant 0 : i32
    %c0_i32_2 = arith.constant 0 : i32
    return %c0_i32, %c0_i32_0, %c0_i32_1 : i32, i32, i32
  }
  func.func @transform_3(%arg0: i32) -> (i32, i32) {
    %c0_i32 = arith.constant 0 : i32
    %c0_i32_0 = arith.constant 0 : i32
    %c0_i32_1 = arith.constant 0 : i32
    return %c0_i32, %c0_i32_0 : i32, i32
  }
  func.func @transform_4(%arg0: i32) -> (i32, i32) {
    %c0_i32 = arith.constant 0 : i32
    %c0_i32_0 = arith.constant 0 : i32
    %c0_i32_1 = arith.constant 0 : i32
    return %c0_i32, %c0_i32_0 : i32, i32
  }
  func.func @transform_5(%arg0: i32) -> (i32, i32) {
    %c0_i32 = arith.constant 0 : i32
    %c0_i32_0 = arith.constant 0 : i32
    %c0_i32_1 = arith.constant 0 : i32
    return %c0_i32, %c0_i32_0 : i32, i32
  }
  func.func @transform_6(%arg0: i32) -> (i32, i32) {
    %c0_i32 = arith.constant 0 : i32
    %c0_i32_0 = arith.constant 0 : i32
    %c0_i32_1 = arith.constant 0 : i32
    return %c0_i32, %c0_i32_0 : i32, i32
  }
  func.func @transform_7(%arg0: i32) -> (i32, i32) {
    %c0_i32 = arith.constant 0 : i32
    %c0_i32_0 = arith.constant 0 : i32
    %c0_i32_1 = arith.constant 0 : i32
    return %c0_i32, %c0_i32_0 : i32, i32
  }
  func.func @transform_8(%arg0: i32) -> (i32, i32, i32) {
    %c0_i32 = arith.constant 0 : i32
    %c0_i32_0 = arith.constant 0 : i32
    %c0_i32_1 = arith.constant 0 : i32
    return %arg0, %c0_i32, %c0_i32_0 : i32, i32, i32
  }
}

module attributes {stable_mosaic.version = 11 : i64} {
  func.func @kernel(%arg0: i32, %arg1: memref<1x12x32xbf16, #tpu.memory_space<vmem>>, %arg2: memref<1x8x1xf32, #tpu.memory_space<vmem>>, %arg3: memref<5x32x128xbf16, #tpu.memory_space<vmem>>, %arg4: memref<1x128xf32, #tpu.memory_space<vmem>>, %arg5: memref<128x128xbf16, #tpu.memory_space<vmem>>, %arg6: memref<1x128xf32, #tpu.memory_space<vmem>>, %arg7: memref<128x128xbf16, #tpu.memory_space<vmem>>, %arg8: memref<1x128xf32, #tpu.memory_space<vmem>>, %arg9: memref<1x1x128xf32, #tpu.memory_space<vmem>>) attributes {dimension_semantics = [#tpu.dimension_semantics<parallel>], iteration_bounds = array<i64: 2>, scalar_prefetch = 0 : i64, scratch_operands = 0 : i64, tpu.core_type = #tpu.core_type<tc>, window_params = [{transform_indices = @transform_0, window_bounds = array<i64: 1, 12, 32>}, {transform_indices = @transform_1, window_bounds = array<i64: 1, 8, 1>}, {pipeline_mode = #tpu.pipeline_mode<synchronous>, transform_indices = @transform_2, window_bounds = array<i64: 5, 32, 128>}, {pipeline_mode = #tpu.pipeline_mode<synchronous>, transform_indices = @transform_3, window_bounds = array<i64: 1, 128>}, {pipeline_mode = #tpu.pipeline_mode<synchronous>, transform_indices = @transform_4, window_bounds = array<i64: 128, 128>}, {pipeline_mode = #tpu.pipeline_mode<synchronous>, transform_indices = @transform_5, window_bounds = array<i64: 1, 128>}, {pipeline_mode = #tpu.pipeline_mode<synchronous>, transform_indices = @transform_6, window_bounds = array<i64: 128, 128>}, {pipeline_mode = #tpu.pipeline_mode<synchronous>, transform_indices = @transform_7, window_bounds = array<i64: 1, 128>}, {transform_indices = @transform_8, window_bounds = array<i64: 1, 1, 128>}]} {
    %c0 = arith.constant 0 : index
    %c0_0 = arith.constant 0 : index
    %c0_1 = arith.constant 0 : index
    %0 = vector.load %arg1[%c0, %c0_0, %c0_1] : memref<1x12x32xbf16, #tpu.memory_space<vmem>>, vector<1x12x32xbf16>
    %cst = arith.constant 0.000000e+00 : f32
    %1 = vector.broadcast %cst : f32 to vector<8x128xf32>
    %2 = vector.extract_strided_slice %0 {offsets = [0, 0, 0], sizes = [1, 8, 32], strides = [1, 1, 1]} : vector<1x12x32xbf16> to vector<1x8x32xbf16>
    %3 = vector.shape_cast %2 : vector<1x8x32xbf16> to vector<8x32xbf16>
    %c0_2 = arith.constant 0 : index
    %c0_3 = arith.constant 0 : index
    %c0_4 = arith.constant 0 : index
    %4 = vector.load %arg3[%c0_2, %c0_3, %c0_4] : memref<5x32x128xbf16, #tpu.memory_space<vmem>>, vector<1x32x128xbf16>
    %5 = vector.shape_cast %4 : vector<1x32x128xbf16> to vector<32x128xbf16>
    %cst_5 = arith.constant dense<0.000000e+00> : vector<8x128xf32>
    %6 = tpu.matmul %3, %5, %cst_5 {dimension_numbers = #tpu.dot_dimension_numbers<[1], [0], [0], [1], [0, 0, 1, 1], [], []>} : vector<8x32xbf16>, vector<32x128xbf16>, vector<8x128xf32> -> vector<8x128xf32>
    %7 = arith.addf %1, %6 : vector<8x128xf32>
    %8 = vector.extract_strided_slice %0 {offsets = [0, 1, 0], sizes = [1, 8, 32], strides = [1, 1, 1]} : vector<1x12x32xbf16> to vector<1x8x32xbf16>
    %9 = vector.shape_cast %8 : vector<1x8x32xbf16> to vector<8x32xbf16>
    %c1 = arith.constant 1 : index
    %c0_6 = arith.constant 0 : index
    %c0_7 = arith.constant 0 : index
    %10 = vector.load %arg3[%c1, %c0_6, %c0_7] : memref<5x32x128xbf16, #tpu.memory_space<vmem>>, vector<1x32x128xbf16>
    %11 = vector.shape_cast %10 : vector<1x32x128xbf16> to vector<32x128xbf16>
    %cst_8 = arith.constant dense<0.000000e+00> : vector<8x128xf32>
    %12 = tpu.matmul %9, %11, %cst_8 {dimension_numbers = #tpu.dot_dimension_numbers<[1], [0], [0], [1], [0, 0, 1, 1], [], []>} : vector<8x32xbf16>, vector<32x128xbf16>, vector<8x128xf32> -> vector<8x128xf32>
    %13 = arith.addf %7, %12 : vector<8x128xf32>
    %14 = vector.extract_strided_slice %0 {offsets = [0, 2, 0], sizes = [1, 8, 32], strides = [1, 1, 1]} : vector<1x12x32xbf16> to vector<1x8x32xbf16>
    %15 = vector.shape_cast %14 : vector<1x8x32xbf16> to vector<8x32xbf16>
    %c2 = arith.constant 2 : index
    %c0_9 = arith.constant 0 : index
    %c0_10 = arith.constant 0 : index
    %16 = vector.load %arg3[%c2, %c0_9, %c0_10] : memref<5x32x128xbf16, #tpu.memory_space<vmem>>, vector<1x32x128xbf16>
    %17 = vector.shape_cast %16 : vector<1x32x128xbf16> to vector<32x128xbf16>
    %cst_11 = arith.constant dense<0.000000e+00> : vector<8x128xf32>
    %18 = tpu.matmul %15, %17, %cst_11 {dimension_numbers = #tpu.dot_dimension_numbers<[1], [0], [0], [1], [0, 0, 1, 1], [], []>} : vector<8x32xbf16>, vector<32x128xbf16>, vector<8x128xf32> -> vector<8x128xf32>
    %19 = arith.addf %13, %18 : vector<8x128xf32>
    %20 = vector.extract_strided_slice %0 {offsets = [0, 3, 0], sizes = [1, 8, 32], strides = [1, 1, 1]} : vector<1x12x32xbf16> to vector<1x8x32xbf16>
    %21 = vector.shape_cast %20 : vector<1x8x32xbf16> to vector<8x32xbf16>
    %c3 = arith.constant 3 : index
    %c0_12 = arith.constant 0 : index
    %c0_13 = arith.constant 0 : index
    %22 = vector.load %arg3[%c3, %c0_12, %c0_13] : memref<5x32x128xbf16, #tpu.memory_space<vmem>>, vector<1x32x128xbf16>
    %23 = vector.shape_cast %22 : vector<1x32x128xbf16> to vector<32x128xbf16>
    %cst_14 = arith.constant dense<0.000000e+00> : vector<8x128xf32>
    %24 = tpu.matmul %21, %23, %cst_14 {dimension_numbers = #tpu.dot_dimension_numbers<[1], [0], [0], [1], [0, 0, 1, 1], [], []>} : vector<8x32xbf16>, vector<32x128xbf16>, vector<8x128xf32> -> vector<8x128xf32>
    %25 = arith.addf %19, %24 : vector<8x128xf32>
    %26 = vector.extract_strided_slice %0 {offsets = [0, 4, 0], sizes = [1, 8, 32], strides = [1, 1, 1]} : vector<1x12x32xbf16> to vector<1x8x32xbf16>
    %27 = vector.shape_cast %26 : vector<1x8x32xbf16> to vector<8x32xbf16>
    %c4 = arith.constant 4 : index
    %c0_15 = arith.constant 0 : index
    %c0_16 = arith.constant 0 : index
    %28 = vector.load %arg3[%c4, %c0_15, %c0_16] : memref<5x32x128xbf16, #tpu.memory_space<vmem>>, vector<1x32x128xbf16>
    %29 = vector.shape_cast %28 : vector<1x32x128xbf16> to vector<32x128xbf16>
    %cst_17 = arith.constant dense<0.000000e+00> : vector<8x128xf32>
    %30 = tpu.matmul %27, %29, %cst_17 {dimension_numbers = #tpu.dot_dimension_numbers<[1], [0], [0], [1], [0, 0, 1, 1], [], []>} : vector<8x32xbf16>, vector<32x128xbf16>, vector<8x128xf32> -> vector<8x128xf32>
    %31 = arith.addf %25, %30 : vector<8x128xf32>
    %c0_18 = arith.constant 0 : index
    %c0_19 = arith.constant 0 : index
    %32 = vector.load %arg4[%c0_18, %c0_19] : memref<1x128xf32, #tpu.memory_space<vmem>>, vector<1x128xf32>
    %33 = vector.broadcast %32 : vector<1x128xf32> to vector<8x128xf32>
    %34 = arith.addf %31, %33 : vector<8x128xf32>
    %cst_20 = arith.constant 0.000000e+00 : f32
    %35 = vector.broadcast %cst_20 : f32 to vector<8x128xf32>
    %36 = arith.maximumf %34, %35 : vector<8x128xf32>
    %c0_21 = arith.constant 0 : index
    %c0_22 = arith.constant 0 : index
    %c0_23 = arith.constant 0 : index
    %37 = vector.load %arg2[%c0_21, %c0_22, %c0_23] : memref<1x8x1xf32, #tpu.memory_space<vmem>>, vector<1x8x1xf32>
    %38 = vector.shape_cast %36 : vector<8x128xf32> to vector<1x8x128xf32>
    %39 = vector.broadcast %37 : vector<1x8x1xf32> to vector<1x8x128xf32>
    %40 = arith.mulf %38, %39 : vector<1x8x128xf32>
    %cst_24 = arith.constant dense<0.000000e+00> : vector<1x128xf32>
    %41 = vector.multi_reduction <add>, %40, %cst_24 [1] : vector<1x8x128xf32> to vector<1x128xf32>
    %cst_25 = arith.constant dense<0.000000e+00> : vector<1x1xf32>
    %42 = vector.multi_reduction <add>, %37, %cst_25 [1] : vector<1x8x1xf32> to vector<1x1xf32>
    %43 = arith.truncf %41 : vector<1x128xf32> to vector<1x128xbf16>
    %c0_26 = arith.constant 0 : index
    %c0_27 = arith.constant 0 : index
    %44 = vector.load %arg5[%c0_26, %c0_27] : memref<128x128xbf16, #tpu.memory_space<vmem>>, vector<128x128xbf16>
    %cst_28 = arith.constant dense<0.000000e+00> : vector<1x128xf32>
    %45 = tpu.matmul %43, %44, %cst_28 {dimension_numbers = #tpu.dot_dimension_numbers<[1], [0], [0], [1], [0, 0, 1, 1], [], []>} : vector<1x128xbf16>, vector<128x128xbf16>, vector<1x128xf32> -> vector<1x128xf32>
    %c0_29 = arith.constant 0 : index
    %c0_30 = arith.constant 0 : index
    %46 = vector.load %arg6[%c0_29, %c0_30] : memref<1x128xf32, #tpu.memory_space<vmem>>, vector<1x128xf32>
    %47 = vector.broadcast %42 : vector<1x1xf32> to vector<1x128xf32>
    %48 = arith.mulf %46, %47 : vector<1x128xf32>
    %49 = arith.addf %45, %48 : vector<1x128xf32>
    %50 = arith.truncf %49 : vector<1x128xf32> to vector<1x128xbf16>
    %c0_31 = arith.constant 0 : index
    %c0_32 = arith.constant 0 : index
    %51 = vector.load %arg7[%c0_31, %c0_32] : memref<128x128xbf16, #tpu.memory_space<vmem>>, vector<128x128xbf16>
    %cst_33 = arith.constant dense<0.000000e+00> : vector<1x128xf32>
    %52 = tpu.matmul %50, %51, %cst_33 {dimension_numbers = #tpu.dot_dimension_numbers<[1], [0], [0], [1], [0, 0, 1, 1], [], []>} : vector<1x128xbf16>, vector<128x128xbf16>, vector<1x128xf32> -> vector<1x128xf32>
    %c0_34 = arith.constant 0 : index
    %c0_35 = arith.constant 0 : index
    %53 = vector.load %arg8[%c0_34, %c0_35] : memref<1x128xf32, #tpu.memory_space<vmem>>, vector<1x128xf32>
    %54 = arith.addf %52, %53 : vector<1x128xf32>
    %55 = vector.shape_cast %54 : vector<1x128xf32> to vector<1x1x128xf32>
    %c0_36 = arith.constant 0 : index
    %c0_37 = arith.constant 0 : index
    %c0_38 = arith.constant 0 : index
    %56 = vector.load %arg9[%c0_36, %c0_37, %c0_38] : memref<1x1x128xf32, #tpu.memory_space<vmem>>, vector<1x1x128xf32>
    tpu.vector_store %arg9[%c0_36, %c0_37, %c0_38], %55 {strides = array<i32>} : memref<1x1x128xf32, #tpu.memory_space<vmem>>, vector<1x1x128xf32>,
    return
  }
  func.func @transform_0(%arg0: i32) -> (i32, i32, i32) {
    %c0_i32 = arith.constant 0 : i32
    %c0_i32_0 = arith.constant 0 : i32
    %c0_i32_1 = arith.constant 0 : i32
    return %arg0, %c0_i32, %c0_i32_0 : i32, i32, i32
  }
  func.func @transform_1(%arg0: i32) -> (i32, i32, i32) {
    %c0_i32 = arith.constant 0 : i32
    %c0_i32_0 = arith.constant 0 : i32
    %c0_i32_1 = arith.constant 0 : i32
    return %arg0, %c0_i32, %c0_i32_0 : i32, i32, i32
  }
  func.func @transform_2(%arg0: i32) -> (i32, i32, i32) {
    %c0_i32 = arith.constant 0 : i32
    %c0_i32_0 = arith.constant 0 : i32
    %c0_i32_1 = arith.constant 0 : i32
    %c0_i32_2 = arith.constant 0 : i32
    return %c0_i32, %c0_i32_0, %c0_i32_1 : i32, i32, i32
  }
  func.func @transform_3(%arg0: i32) -> (i32, i32) {
    %c0_i32 = arith.constant 0 : i32
    %c0_i32_0 = arith.constant 0 : i32
    %c0_i32_1 = arith.constant 0 : i32
    return %c0_i32, %c0_i32_0 : i32, i32
  }
  func.func @transform_4(%arg0: i32) -> (i32, i32) {
    %c0_i32 = arith.constant 0 : i32
    %c0_i32_0 = arith.constant 0 : i32
    %c0_i32_1 = arith.constant 0 : i32
    return %c0_i32, %c0_i32_0 : i32, i32
  }
  func.func @transform_5(%arg0: i32) -> (i32, i32) {
    %c0_i32 = arith.constant 0 : i32
    %c0_i32_0 = arith.constant 0 : i32
    %c0_i32_1 = arith.constant 0 : i32
    return %c0_i32, %c0_i32_0 : i32, i32
  }
  func.func @transform_6(%arg0: i32) -> (i32, i32) {
    %c0_i32 = arith.constant 0 : i32
    %c0_i32_0 = arith.constant 0 : i32
    %c0_i32_1 = arith.constant 0 : i32
    return %c0_i32, %c0_i32_0 : i32, i32
  }
  func.func @transform_7(%arg0: i32) -> (i32, i32) {
    %c0_i32 = arith.constant 0 : i32
    %c0_i32_0 = arith.constant 0 : i32
    %c0_i32_1 = arith.constant 0 : i32
    return %c0_i32, %c0_i32_0 : i32, i32
  }
  func.func @transform_8(%arg0: i32) -> (i32, i32, i32) {
    %c0_i32 = arith.constant 0 : i32
    %c0_i32_0 = arith.constant 0 : i32
    %c0_i32_1 = arith.constant 0 : i32
    return %arg0, %c0_i32, %c0_i32_0 : i32, i32, i32
  }
}

</mosaic_0001>

<llo_original>
// kernel: tpu_custom_call.1
$region0: #{tpu_custom_call.1}
  #allocation0 [shape = 'u32[]', space=smem, size = 0x4, offset = 0x4, fixed_abs, tag = 'smem constant byte address 0x4 - core index']
  #allocation1 [shape = 'u32[144,128]{1,0:T(1,128)}', space=vmem, size = 0x12000, scoped, tag = 'internal scratch']
  %s0 = inlined_call_operand.vmem [shape: bf16[2,12,32], index: 0, kind: input, shape index: {}]
  %s1 = inlined_call_operand.vmem [shape: f32[2,8,1], index: 1, kind: input, shape index: {}]
  %s2 = inlined_call_operand.hbm [shape: bf16[5,32,128], index: 2, kind: input, shape index: {}]
  %s3 = inlined_call_operand.vmem [shape: f32[1,128], index: 3, kind: input, shape index: {}]
  %s4 = inlined_call_operand.hbm [shape: bf16[128,128], index: 4, kind: input, shape index: {}]
  %s5 = inlined_call_operand.vmem [shape: f32[1,128], index: 5, kind: input, shape index: {}]
  %s6 = inlined_call_operand.hbm [shape: bf16[128,128], index: 6, kind: input, shape index: {}]
  %s7 = inlined_call_operand.vmem [shape: f32[1,128], index: 7, kind: input, shape index: {}]
  %s8 = inlined_call_operand.hbm [shape: f32[2,1,128], index: 8, kind: output, shape index: {}]
  %s9 = sld [smem:[#allocation0]]
  $region77: #{tpu_custom_call.1} parent=0
    _
  %s11 = ssub.s32 1, %s9
  %s12 = scalar_select 0, %s11, %s9
  $region1: #{tpu_custom_call.1} parent=0
    #allocation2 [shape = 'u8[40960]{0}', space=vmem, size = 0xa000, scoped, tag = 'input window, operand 2, single buffered']
    #allocation3 [shape = 's32[2]{0}', space=sflag, size = 0x8, scoped, tag = 'scoped memory for tpu_custom_call.1']
    #allocation4 [shape = 's32[2]{0}', space=sflag, size = 0x8, scoped, tag = 'scoped memory for tpu_custom_call.1']
    #allocation5 [shape = 'u8[32768]{0}', space=vmem, size = 0x8000, scoped, tag = 'input window, operand 4, single buffered']
    #allocation6 [shape = 's32[1]{0}', space=sflag, size = 0x4, scoped, tag = 'scoped memory for tpu_custom_call.1']
    #allocation7 [shape = 'u8[32768]{0}', space=vmem, size = 0x8000, scoped, tag = 'input window, operand 6, single buffered']
    #allocation8 [shape = 'u8[1024]{0}', space=vmem, size = 0x400, scoped, tag = 'output window, operand 0']
    %13 = vsyncpa [#allocation3], 0
    %14 = vsyncpa [#allocation6], 0
    %15 = vsyncpa [#allocation4], 0
    %s16 = scalar_lea.sflag [#allocation4], 1
    %17 = vsyncpa %s16, 0
    loop: start=0, step=1, limit=4
    $region2: #{tpu_custom_call.1} parent=1 // loop_pre_header
      _
    $region3: #{tpu_custom_call.1} parent=1 // loop_header
      %s19 = sphi 0, %s23
      %p20 = scmp.ge.s32.totalorder %s19, 4
      %s29 = sphi 0, %s31
      %s32 = sphi 0, %s29
      %s33 = sphi 0, %s32
      %s49 = sphi 0, %s33
      %s55 = sphi 0, %s57
      %s58 = sphi 0, %s55
      %s59 = sphi 0, %s58
      %s75 = sphi 0, %s59
      %s79 = sphi 0, %s79
      %s81 = sphi 0, %s79
      %s82 = sphi 0, %s81
      %s96 = sphi 0, %s82
      %s100 = sphi 0, %s100
      %s102 = sphi 0, %s100
      %s103 = sphi 0, %s102
      %s117 = sphi 0, %s103
      %s121 = sphi 0, %s121
      %s123 = sphi 0, %s121
      %s124 = sphi 0, %s123
      %s138 = sphi 0, %s124
      %s142 = sphi 0, %s142
      %s144 = sphi 0, %s142
      %s145 = sphi 0, %s144
      %s159 = sphi 0, %s145
      %s163 = sphi 0, %s163
      %s165 = sphi 0, %s163
      %s166 = sphi 0, %s165
      %s180 = sphi 0, %s166
      %s184 = sphi 0, %s184
      %s186 = sphi 0, %s184
      %s187 = sphi 0, %s186
      %s201 = sphi 0, %s187
      %s207 = sphi 0, %s209
      %s210 = sphi 0, %s207
      %s211 = sphi 0, %s210
      %s227 = sphi 0, %s211
    $region4: #{tpu_custom_call.1} parent=1 // loop_header_branch
      %22 = sbr.rel (%p20) target = $region8
    $region5: #{tpu_custom_call.1} parent=1 // loop_body
      %s24 = ssub.s32 %s19, 1
      %s25 = ssub.s32 %s19, 2
      %s26 = sadd.s32 %s19, 1
      %s27 = ssub.s32 %s19, %s26
      %p28 = scmp.eq.s32.totalorder %s27, 0
      %s30 = sadd.s32 %s29, 1
      %s31 = scalar_select %p28, %s29, %s30
      %p34 = pneg %p28
      %p35 = scmp.eq.s32.totalorder %s19, 1
      %p36 = por %p34, %p35
      %p37 = scmp.ne.s32.totalorder %s29, %s32
      %p38 = scmp.eq.s32.totalorder %s19, 0
      %p39 = por %p37, %p38
      %p40 = scmp.ne.s32.totalorder %s29, %s32
      %p41 = scmp.eq.s32.totalorder %s24, 1
      %p42 = por %p40, %p41
      %p43 = scmp.ne.s32.totalorder %s32, %s33
      %p44 = scmp.eq.s32.totalorder %s24, 0
      %p45 = por %p43, %p44
      %p46 = scmp.ne.s32.totalorder %s32, %s33
      %p47 = scmp.eq.s32.totalorder %s25, 1
      %p48 = por %p46, %p47
      %p50 = scmp.ne.s32.totalorder %s33, %s49
      %p51 = scmp.eq.s32.totalorder %s25, 0
      %p52 = por %p50, %p51
      %s53 = ssub.s32 %s19, %s26
      %p54 = scmp.eq.s32.totalorder %s53, 0
      %s56 = sadd.s32 %s55, 1
      %s57 = scalar_select %p54, %s55, %s56
      %p60 = pneg %p54
      %p61 = scmp.eq.s32.totalorder %s19, 1
      %p62 = por %p60, %p61
      %p63 = scmp.ne.s32.totalorder %s55, %s58
      %p64 = scmp.eq.s32.totalorder %s19, 0
      %p65 = por %p63, %p64
      %p66 = scmp.ne.s32.totalorder %s55, %s58
      %p67 = scmp.eq.s32.totalorder %s24, 1
      %p68 = por %p66, %p67
      %p69 = scmp.ne.s32.totalorder %s58, %s59
      %p70 = scmp.eq.s32.totalorder %s24, 0
      %p71 = por %p69, %p70
      %p72 = scmp.ne.s32.totalorder %s58, %s59
      %p73 = scmp.eq.s32.totalorder %s25, 1
      %p74 = por %p72, %p73
      %p76 = scmp.ne.s32.totalorder %s59, %s75
      %p77 = scmp.eq.s32.totalorder %s25, 0
      %p78 = por %p76, %p77
      %s80 = sadd.s32 %s79, 1
      %p83 = scmp.eq.s32.totalorder %s19, 1
      %p84 = scmp.ne.s32.totalorder %s79, %s81
      %p85 = scmp.eq.s32.totalorder %s19, 0
      %p86 = por %p84, %p85
      %p87 = scmp.ne.s32.totalorder %s79, %s81
      %p88 = scmp.eq.s32.totalorder %s24, 1
      %p89 = por %p87, %p88
      %p90 = scmp.ne.s32.totalorder %s81, %s82
      %p91 = scmp.eq.s32.totalorder %s24, 0
      %p92 = por %p90, %p91
      %p93 = scmp.ne.s32.totalorder %s81, %s82
      %p94 = scmp.eq.s32.totalorder %s25, 1
      %p95 = por %p93, %p94
      %p97 = scmp.ne.s32.totalorder %s82, %s96
      %p98 = scmp.eq.s32.totalorder %s25, 0
      %p99 = por %p97, %p98
      %s101 = sadd.s32 %s100, 1
      %p104 = scmp.eq.s32.totalorder %s19, 1
      %p105 = scmp.ne.s32.totalorder %s100, %s102
      %p106 = scmp.eq.s32.totalorder %s19, 0
      %p107 = por %p105, %p106
      %p108 = scmp.ne.s32.totalorder %s100, %s102
      %p109 = scmp.eq.s32.totalorder %s24, 1
      %p110 = por %p108, %p109
      %p111 = scmp.ne.s32.totalorder %s102, %s103
      %p112 = scmp.eq.s32.totalorder %s24, 0
      %p113 = por %p111, %p112
      %p114 = scmp.ne.s32.totalorder %s102, %s103
      %p115 = scmp.eq.s32.totalorder %s25, 1
      %p116 = por %p114, %p115
      %p118 = scmp.ne.s32.totalorder %s103, %s117
      %p119 = scmp.eq.s32.totalorder %s25, 0
      %p120 = por %p118, %p119
      %s122 = sadd.s32 %s121, 1
      %p125 = scmp.eq.s32.totalorder %s19, 1
      %p126 = scmp.ne.s32.totalorder %s121, %s123
      %p127 = scmp.eq.s32.totalorder %s19, 0
      %p128 = por %p126, %p127
      %p129 = scmp.ne.s32.totalorder %s121, %s123
      %p130 = scmp.eq.s32.totalorder %s24, 1
      %p131 = por %p129, %p130
      %p132 = scmp.ne.s32.totalorder %s123, %s124
      %p133 = scmp.eq.s32.totalorder %s24, 0
      %p134 = por %p132, %p133
      %p135 = scmp.ne.s32.totalorder %s123, %s124
      %p136 = scmp.eq.s32.totalorder %s25, 1
      %p137 = por %p135, %p136
      %p139 = scmp.ne.s32.totalorder %s124, %s138
      %p140 = scmp.eq.s32.totalorder %s25, 0
      %p141 = por %p139, %p140
      %s143 = sadd.s32 %s142, 1
      %p146 = scmp.eq.s32.totalorder %s19, 1
      %p147 = scmp.ne.s32.totalorder %s142, %s144
      %p148 = scmp.eq.s32.totalorder %s19, 0
      %p149 = por %p147, %p148
      %p150 = scmp.ne.s32.totalorder %s142, %s144
      %p151 = scmp.eq.s32.totalorder %s24, 1
      %p152 = por %p150, %p151
      %p153 = scmp.ne.s32.totalorder %s144, %s145
      %p154 = scmp.eq.s32.totalorder %s24, 0
      %p155 = por %p153, %p154
      %p156 = scmp.ne.s32.totalorder %s144, %s145
      %p157 = scmp.eq.s32.totalorder %s25, 1
      %p158 = por %p156, %p157
      %p160 = scmp.ne.s32.totalorder %s145, %s159
      %p161 = scmp.eq.s32.totalorder %s25, 0
      %p162 = por %p160, %p161
      %s164 = sadd.s32 %s163, 1
      %p167 = scmp.eq.s32.totalorder %s19, 1
      %p168 = scmp.ne.s32.totalorder %s163, %s165
      %p169 = scmp.eq.s32.totalorder %s19, 0
      %p170 = por %p168, %p169
      %p171 = scmp.ne.s32.totalorder %s163, %s165
      %p172 = scmp.eq.s32.totalorder %s24, 1
      %p173 = por %p171, %p172
      %p174 = scmp.ne.s32.totalorder %s165, %s166
      %p175 = scmp.eq.s32.totalorder %s24, 0
      %p176 = por %p174, %p175
      %p177 = scmp.ne.s32.totalorder %s165, %s166
      %p178 = scmp.eq.s32.totalorder %s25, 1
      %p179 = por %p177, %p178
      %p181 = scmp.ne.s32.totalorder %s166, %s180
      %p182 = scmp.eq.s32.totalorder %s25, 0
      %p183 = por %p181, %p182
      %s185 = sadd.s32 %s184, 1
      %p188 = scmp.eq.s32.totalorder %s19, 1
      %p189 = scmp.ne.s32.totalorder %s184, %s186
      %p190 = scmp.eq.s32.totalorder %s19, 0
      %p191 = por %p189, %p190
      %p192 = scmp.ne.s32.totalorder %s184, %s186
      %p193 = scmp.eq.s32.totalorder %s24, 1
      %p194 = por %p192, %p193
      %p195 = scmp.ne.s32.totalorder %s186, %s187
      %p196 = scmp.eq.s32.totalorder %s24, 0
      %p197 = por %p195, %p196
      %p198 = scmp.ne.s32.totalorder %s186, %s187
      %p199 = scmp.eq.s32.totalorder %s25, 1
      %p200 = por %p198, %p199
      %p202 = scmp.ne.s32.totalorder %s187, %s201
      %p203 = scmp.eq.s32.totalorder %s25, 0
      %p204 = por %p202, %p203
      %s205 = ssub.s32 %s19, %s26
      %p206 = scmp.eq.s32.totalorder %s205, 0
      %s208 = sadd.s32 %s207, 1
      %s209 = scalar_select %p206, %s207, %s208
      %p212 = pneg %p206
      %p213 = scmp.eq.s32.totalorder %s19, 1
      %p214 = por %p212, %p213
      %p215 = scmp.ne.s32.totalorder %s207, %s210
      %p216 = scmp.eq.s32.totalorder %s19, 0
      %p217 = por %p215, %p216
      %p218 = scmp.ne.s32.totalorder %s207, %s210
      %p219 = scmp.eq.s32.totalorder %s24, 1
      %p220 = por %p218, %p219
      %p221 = scmp.ne.s32.totalorder %s210, %s211
      %p222 = scmp.eq.s32.totalorder %s24, 0
      %p223 = por %p221, %p222
      %p224 = scmp.ne.s32.totalorder %s210, %s211
      %p225 = scmp.eq.s32.totalorder %s25, 1
      %p226 = por %p224, %p225
      %p228 = scmp.ne.s32.totalorder %s211, %s227
      %p229 = scmp.eq.s32.totalorder %s25, 0
      %p230 = por %p228, %p229
      %p231 = scmp.le.s32.totalorder 1, %s19
      %p232 = scmp.lt.s32.totalorder %s19, 3
      %p233 = pnand %p231, %p232
      %p234 = pneg %p233
      // Predicated region
      $region9: #{tpu_custom_call.1} parent=5 // pred_check
        _
      $region10: #{tpu_custom_call.1} parent=5 // pred_check_branch
        %236 = sbr.rel (%p233) target = $region12
      $region11: #{tpu_custom_call.1} parent=5 // pred_region
        %s237 = ssub.s32 %s19, 1
        // Predicated region
        $region13: #{tpu_custom_call.1} parent=11 // pred_check
          %p238 = pneg %p92
        $region14: #{tpu_custom_call.1} parent=11 // pred_check_branch
          %240 = sbr.rel (%p238) target = $region16
        $region15: #{tpu_custom_call.1} parent=11 // pred_region
          %s242 = ssub.s32 1280, 1280
          %243 = vsyncadd [#allocation3], %s242
          %s244 = sshll.u32 [#allocation2], 4
          %s245 = int_to_ptr.vmem [resolvable:$true] %s244
          %250 = dma.hbm_to_vmem [thread:$0]  %s2, 1280, %s245, [#allocation3], 64, 64, 4
        $region16: #{tpu_custom_call.1} parent=11 // pred_fallthru
          _
        // Predicated region
        $region17: #{tpu_custom_call.1} parent=11 // pred_check
          %p251 = pneg %p113
        $region18: #{tpu_custom_call.1} parent=11 // pred_check_branch
          %253 = sbr.rel (%p251) target = $region20
        $region19: #{tpu_custom_call.1} parent=11 // pred_region
          _
        $region20: #{tpu_custom_call.1} parent=11 // pred_fallthru
          _
        // Predicated region
        $region21: #{tpu_custom_call.1} parent=11 // pred_check
          %p254 = pneg %p134
        $region22: #{tpu_custom_call.1} parent=11 // pred_check_branch
          %256 = sbr.rel (%p254) target = $region24
        $region23: #{tpu_custom_call.1} parent=11 // pred_region
          %s258 = ssub.s32 1024, 1024
          %259 = vsyncadd [#allocation6], %s258
          %s260 = sshll.u32 [#allocation5], 4
          %s261 = int_to_ptr.vmem [resolvable:$true] %s260
          %266 = dma.hbm_to_vmem [thread:$0]  %s4, 1024, %s261, [#allocation6], 64, 64, 4
        $region24: #{tpu_custom_call.1} parent=11 // pred_fallthru
          _
        // Predicated region
        $region25: #{tpu_custom_call.1} parent=11 // pred_check
          %p267 = pneg %p155
        $region26: #{tpu_custom_call.1} parent=11 // pred_check_branch
          %269 = sbr.rel (%p267) target = $region28
        $region27: #{tpu_custom_call.1} parent=11 // pred_region
          _
        $region28: #{tpu_custom_call.1} parent=11 // pred_fallthru
          _
        // Predicated region
        $region29: #{tpu_custom_call.1} parent=11 // pred_check
          %p270 = pneg %p176
        $region30: #{tpu_custom_call.1} parent=11 // pred_check_branch
          %272 = sbr.rel (%p270) target = $region32
        $region31: #{tpu_custom_call.1} parent=11 // pred_region
          %s274 = ssub.s32 1024, 1024
          %275 = vsyncadd [#allocation6], %s274
          %s276 = sshll.u32 [#allocation7], 4
          %s277 = int_to_ptr.vmem [resolvable:$true] %s276
          %282 = dma.hbm_to_vmem [thread:$0]  %s6, 1024, %s277, [#allocation6], 64, 64, 4
        $region32: #{tpu_custom_call.1} parent=11 // pred_fallthru
          _
        // Predicated region
        $region33: #{tpu_custom_call.1} parent=11 // pred_check
          %p283 = pneg %p197
        $region34: #{tpu_custom_call.1} parent=11 // pred_check_branch
          %285 = sbr.rel (%p283) target = $region36
        $region35: #{tpu_custom_call.1} parent=11 // pred_region
          _
        $region36: #{tpu_custom_call.1} parent=11 // pred_fallthru
          _
      $region12: #{tpu_custom_call.1} parent=5 // pred_fallthru
        _
      %p286 = scmp.lt.s32.totalorder %s19, 2
      // Predicated region
      $region37: #{tpu_custom_call.1} parent=5 // pred_check
        %p287 = pneg %p286
      $region38: #{tpu_custom_call.1} parent=5 // pred_check_branch
        %289 = sbr.rel (%p287) target = $region40
      $region39: #{tpu_custom_call.1} parent=5 // pred_region
        // Predicated region
        $region41: #{tpu_custom_call.1} parent=39 // pred_check
          %p290 = pneg %p39
        $region42: #{tpu_custom_call.1} parent=39 // pred_check_branch
          %292 = sbr.rel (%p290) target = $region44
        $region43: #{tpu_custom_call.1} parent=39 // pred_region
          %p293 = scmp.lt.s32.totalorder %s19, 1
          %s294 = scalar_select %p293, %s19, 1
          %s295 = smul.addr %s294, 2
          %s296 = smul.addr %s295, 4
          %s297 = scalar_lea.vmem %s0, %s296
        $region44: #{tpu_custom_call.1} parent=39 // pred_fallthru
          _
        // Predicated region
        $region45: #{tpu_custom_call.1} parent=39 // pred_check
          %p298 = pneg %p65
        $region46: #{tpu_custom_call.1} parent=39 // pred_check_branch
          %300 = sbr.rel (%p298) target = $region48
        $region47: #{tpu_custom_call.1} parent=39 // pred_region
          %p301 = scmp.lt.s32.totalorder %s19, 1
          %s302 = scalar_select %p301, %s19, 1
          %s303 = smul.addr %s302, 8
          %s304 = scalar_lea.vmem %s1, %s303
        $region48: #{tpu_custom_call.1} parent=39 // pred_fallthru
          _
      $region40: #{tpu_custom_call.1} parent=5 // pred_fallthru
        _
      %p305 = scmp.le.s32.totalorder 1, %s19
      %p306 = scmp.lt.s32.totalorder %s19, 3
      %p307 = pnand %p305, %p306
      %p308 = pneg %p307
      // Predicated region
      $region49: #{tpu_custom_call.1} parent=5 // pred_check
        _
      $region50: #{tpu_custom_call.1} parent=5 // pred_check_branch
        %310 = sbr.rel (%p307) target = $region52
      $region51: #{tpu_custom_call.1} parent=5 // pred_region
        %s311 = ssub.s32 %s19, 1
        // Predicated region
        $region53: #{tpu_custom_call.1} parent=51 // pred_check
          %p312 = pneg %p92
        $region54: #{tpu_custom_call.1} parent=51 // pred_check_branch
          %314 = sbr.rel (%p312) target = $region56
        $region55: #{tpu_custom_call.1} parent=51 // pred_region
          %315 = dma.done [#allocation3], 1280
        $region56: #{tpu_custom_call.1} parent=51 // pred_fallthru
          _
        // Predicated region
        $region57: #{tpu_custom_call.1} parent=51 // pred_check
          %p316 = pneg %p134
        $region58: #{tpu_custom_call.1} parent=51 // pred_check_branch
          %318 = sbr.rel (%p316) target = $region60
        $region59: #{tpu_custom_call.1} parent=51 // pred_region
          %319 = dma.done [#allocation6], 1024
        $region60: #{tpu_custom_call.1} parent=51 // pred_fallthru
          _
        // Predicated region
        $region61: #{tpu_custom_call.1} parent=51 // pred_check
          %p320 = pneg %p176
        $region62: #{tpu_custom_call.1} parent=51 // pred_check_branch
          %322 = sbr.rel (%p320) target = $region64
        $region63: #{tpu_custom_call.1} parent=51 // pred_region
          %323 = dma.done [#allocation6], 1024
        $region64: #{tpu_custom_call.1} parent=51 // pred_fallthru
          _
        %p324 = scmp.lt.s32.totalorder %s24, 1
        %s325 = scalar_select %p324, %s24, 1
        %s326 = smul.addr %s325, 2
        %s327 = smul.addr %s326, 4
        %s328 = scalar_lea.vmem %s0, %s327
        %p329 = pneg %p45
        %p330 = pneg %p42
        %p331 = scmp.lt.s32.totalorder %s24, 1
        %s332 = scalar_select %p331, %s24, 1
        %s333 = smul.addr %s332, 8
        %s334 = scalar_lea.vmem %s1, %s333
        %p335 = pneg %p71
        %p336 = pneg %p68
        %p337 = pneg %p92
        %p338 = pneg %p89
        %p339 = pneg %p113
        %p340 = pneg %p110
        %p341 = pneg %p134
        %p342 = pneg %p131
        %p343 = pneg %p155
        %p344 = pneg %p152
        %p345 = pneg %p176
        %p346 = pneg %p173
        %p347 = pneg %p197
        %p348 = pneg %p194
        %p349 = pneg %p223
        %p350 = pneg %p220
        %s351 = sand.u32 %s210, 1
        %s352 = scalar_lea.sflag [#allocation4], %s351
        %s353 = sand.u32 %s210, 1
        %s354 = scalar_lea.vmem [#allocation8], %s353
        %p355 = scmp.lt.s32.totalorder %s24, 1
        %s356 = scalar_select %p355, %s24, 1
        %s357 = smul.addr %s356, 2
        %s358 = smul.addr %s357, 4
        %s359 = scalar_lea.vmem %s0, %s358
        %p360 = scmp.lt.s32.totalorder %s24, 1
        %s361 = scalar_select %p360, %s24, 1
        %s362 = smul.addr %s361, 8
        %s363 = scalar_lea.vmem %s1, %s362
        %v365 = vld [vmem:[%s359] sm:$0xf]
        %v366 = vld [vmem:[%s359 + $0x4] sm:$0x3]
        %v367 = vld [vmem:[#allocation2] sm:$0xf]
        %v368 = vld [vmem:[#allocation2 + $0x4] sm:$0xf]
        %v369 = vld [vmem:[#allocation2 + $0x8] sm:$0xf]
        %v370 = vld [vmem:[#allocation2 + $0xc] sm:$0xf]
        %s371 = scalar_lea.vmem [#allocation2], 16
        %v372 = vld [vmem:[%s371] sm:$0xf]
        %v373 = vld [vmem:[%s371 + $0x4] sm:$0xf]
        %v374 = vld [vmem:[%s371 + $0x8] sm:$0xf]
        %v375 = vld [vmem:[%s371 + $0xc] sm:$0xf]
        %v378 = vunpack.c.l.b16 %v365
        %v379 = vunpack.c.l.b16 %v366
        %v380 = vpack.c.b16 %v379, %v378
        %v382 = vshrl.u32 %v380, 16
        %v384 = vshll.u32 %v380, 16
        %v386 = vrot.slane %v384, 1
        %v387 = vor.u32 %v382, %v386
        %v392 = vunpack.c.l.b16 %v372
        %v393 = vunpack.c.l.b16 %v373
        %v394 = vunpack.c.l.b16 %v374
        %v395 = vunpack.c.l.b16 %v375
        %v396 = vpack.c.b16 %v393, %v392
        %v397 = vpack.c.b16 %v395, %v394
        %vm400 = vcmask 261120
        %v402 = vsel %vm400, %v387, 0
        %404 = vmatprep.subr.bf16.mxu0 0
        %405 = vmatpush1.bf16.msra.mxu0 0
        %406 = vmatprep.subr.bf16.mxu0 0
        %407 = vmatpush1.bf16.msra.mxu0 0
        %408 = vmatprep.subr.bf16.mxu0 0
        %409 = vmatpush1.bf16.msra.mxu0 0
        %410 = vmatprep.subr.bf16.mxu0 0
        %411 = vmatpush1.bf16.msra.mxu0 0
        %412 = vmatprep.subr.bf16.mxu0 0
        %413 = vmatpush1.bf16.msra.mxu0 0
        %414 = vmatprep.subr.bf16.mxu0 0
        %415 = vmatpush1.bf16.msra.mxu0 0
        %416 = vmatprep.subr.bf16.mxu0 0
        %417 = vmatpush1.bf16.msra.mxu0 %v397
        %418 = vmatprep.subr.bf16.mxu0 0
        %419 = vmatpush1.bf16.msra.mxu0 %v396
        %420 = vmatprep.subr.bf16.mxu0 0
        %421 = vmatpush2.bf16.msra.mxu0 0
        %422 = vmatprep.subr.bf16.mxu0 0
        %423 = vmatpush2.bf16.msra.mxu0 0
        %424 = vmatprep.subr.bf16.mxu0 0
        %425 = vmatpush2.bf16.msra.mxu0 0
        %426 = vmatprep.subr.bf16.mxu0 0
        %427 = vmatpush2.bf16.msra.mxu0 0
        %428 = vmatprep.subr.bf16.mxu0 0
        %429 = vmatpush2.bf16.msra.mxu0 0
        %430 = vmatprep.subr.bf16.mxu0 0
        %431 = vmatpush2.bf16.msra.mxu0 0
        %432 = vmatprep.subr.bf16.mxu0 0
        %433 = vmatpush2.bf16.msra.mxu0 0
        %434 = vmatprep.subr.bf16.mxu0 0
        %435 = vmatpush2.bf16.msra.mxu0 0
        %436 = vmatprep.mubr.bf16.mxu0 0
        %437 = vmatmul.mubr.bf16.gmra.mxu0 %v402
        %v438 = vpop.f32.mrf.mxu0
        %v439 = vadd.f32 0.0, %v438
        %v440 = vpop.f32.mrf.mxu0
        %v441 = vpop.f32.mrf.mxu0
        %v442 = vpop.f32.mrf.mxu0
        %443 = vdwg.mxu0
        %v448 = vunpack.c.l.b16 %v367
        %v449 = vunpack.c.l.b16 %v368
        %v450 = vunpack.c.l.b16 %v369
        %v451 = vunpack.c.l.b16 %v370
        %v452 = vpack.c.b16 %v449, %v448
        %v453 = vpack.c.b16 %v451, %v450
        %v457 = vsel %vm400, %v365, 0
        %459 = vmatprep.subr.bf16.mxu0 0
        %460 = vmatpush1.bf16.msra.mxu0 0
        %461 = vmatprep.subr.bf16.mxu0 0
        %462 = vmatpush1.bf16.msra.mxu0 0
        %463 = vmatprep.subr.bf16.mxu0 0
        %464 = vmatpush1.bf16.msra.mxu0 0
        %465 = vmatprep.subr.bf16.mxu0 0
        %466 = vmatpush1.bf16.msra.mxu0 0
        %467 = vmatprep.subr.bf16.mxu0 0
        %468 = vmatpush1.bf16.msra.mxu0 0
        %469 = vmatprep.subr.bf16.mxu0 0
        %470 = vmatpush1.bf16.msra.mxu0 0
        %471 = vmatprep.subr.bf16.mxu0 0
        %472 = vmatpush1.bf16.msra.mxu0 %v453
        %473 = vmatprep.subr.bf16.mxu0 0
        %474 = vmatpush1.bf16.msra.mxu0 %v452
        %475 = vmatprep.subr.bf16.mxu0 0
        %476 = vmatpush2.bf16.msra.mxu0 0
        %477 = vmatprep.subr.bf16.mxu0 0
        %478 = vmatpush2.bf16.msra.mxu0 0
        %479 = vmatprep.subr.bf16.mxu0 0
        %480 = vmatpush2.bf16.msra.mxu0 0
        %481 = vmatprep.subr.bf16.mxu0 0
        %482 = vmatpush2.bf16.msra.mxu0 0
        %483 = vmatprep.subr.bf16.mxu0 0
        %484 = vmatpush2.bf16.msra.mxu0 0
        %485 = vmatprep.subr.bf16.mxu0 0
        %486 = vmatpush2.bf16.msra.mxu0 0
        %487 = vmatprep.subr.bf16.mxu0 0
        %488 = vmatpush2.bf16.msra.mxu0 0
        %489 = vmatprep.subr.bf16.mxu0 0
        %490 = vmatpush2.bf16.msra.mxu0 0
        %491 = vmatprep.mubr.bf16.mxu0 0
        %492 = vmatmul.mubr.bf16.gmra.mxu0 %v457
        %v493 = vpop.f32.mrf.mxu0
        %v494 = vadd.f32 %v439, %v493
        %v495 = vpop.f32.mrf.mxu0
        %v496 = vpop.f32.mrf.mxu0
        %v497 = vpop.f32.mrf.mxu0
        %498 = vdwg.mxu0
        %s499 = scalar_lea.vmem [#allocation2], 32
        %v500 = vld [vmem:[%s499] sm:$0xf]
        %v501 = vld [vmem:[%s499 + $0x4] sm:$0xf]
        %v502 = vld [vmem:[%s499 + $0x8] sm:$0xf]
        %v503 = vld [vmem:[%s499 + $0xc] sm:$0xf]
        %v504 = vrot.slane %v380, 1
        %v509 = vunpack.c.l.b16 %v500
        %v510 = vunpack.c.l.b16 %v501
        %v511 = vunpack.c.l.b16 %v502
        %v512 = vunpack.c.l.b16 %v503
        %v513 = vpack.c.b16 %v510, %v509
        %v514 = vpack.c.b16 %v512, %v511
        %v518 = vsel %vm400, %v504, 0
        %520 = vmatprep.subr.bf16.mxu0 0
        %521 = vmatpush1.bf16.msra.mxu0 0
        %522 = vmatprep.subr.bf16.mxu0 0
        %523 = vmatpush1.bf16.msra.mxu0 0
        %524 = vmatprep.subr.bf16.mxu0 0
        %525 = vmatpush1.bf16.msra.mxu0 0
        %526 = vmatprep.subr.bf16.mxu0 0
        %527 = vmatpush1.bf16.msra.mxu0 0
        %528 = vmatprep.subr.bf16.mxu0 0
        %529 = vmatpush1.bf16.msra.mxu0 0
        %530 = vmatprep.subr.bf16.mxu0 0
        %531 = vmatpush1.bf16.msra.mxu0 0
        %532 = vmatprep.subr.bf16.mxu0 0
        %533 = vmatpush1.bf16.msra.mxu0 %v514
        %534 = vmatprep.subr.bf16.mxu0 0
        %535 = vmatpush1.bf16.msra.mxu0 %v513
        %536 = vmatprep.subr.bf16.mxu0 0
        %537 = vmatpush2.bf16.msra.mxu0 0
        %538 = vmatprep.subr.bf16.mxu0 0
        %539 = vmatpush2.bf16.msra.mxu0 0
        %540 = vmatprep.subr.bf16.mxu0 0
        %541 = vmatpush2.bf16.msra.mxu0 0
        %542 = vmatprep.subr.bf16.mxu0 0
        %543 = vmatpush2.bf16.msra.mxu0 0
        %544 = vmatprep.subr.bf16.mxu0 0
        %545 = vmatpush2.bf16.msra.mxu0 0
        %546 = vmatprep.subr.bf16.mxu0 0
        %547 = vmatpush2.bf16.msra.mxu0 0
        %548 = vmatprep.subr.bf16.mxu0 0
        %549 = vmatpush2.bf16.msra.mxu0 0
        %550 = vmatprep.subr.bf16.mxu0 0
        %551 = vmatpush2.bf16.msra.mxu0 0
        %552 = vmatprep.mubr.bf16.mxu0 0
        %553 = vmatmul.mubr.bf16.gmra.mxu0 %v518
        %v554 = vpop.f32.mrf.mxu0
        %v555 = vadd.f32 0.0, %v554
        %v556 = vpop.f32.mrf.mxu0
        %v557 = vpop.f32.mrf.mxu0
        %v558 = vpop.f32.mrf.mxu0
        %559 = vdwg.mxu0
        %v560 = vadd.f32 %v494, %v555
        %s561 = scalar_lea.vmem [#allocation2], 48
        %v562 = vld [vmem:[%s561] sm:$0xf]
        %v563 = vld [vmem:[%s561 + $0x4] sm:$0xf]
        %v564 = vld [vmem:[%s561 + $0x8] sm:$0xf]
        %v565 = vld [vmem:[%s561 + $0xc] sm:$0xf]
        %v566 = vrot.slane %v382, 1
        %v567 = vrot.slane %v384, 2
        %v568 = vor.u32 %v566, %v567
        %v573 = vunpack.c.l.b16 %v562
        %v574 = vunpack.c.l.b16 %v563
        %v575 = vunpack.c.l.b16 %v564
        %v576 = vunpack.c.l.b16 %v565
        %v577 = vpack.c.b16 %v574, %v573
        %v578 = vpack.c.b16 %v576, %v575
        %v582 = vsel %vm400, %v568, 0
        %584 = vmatprep.subr.bf16.mxu0 0
        %585 = vmatpush1.bf16.msra.mxu0 0
        %586 = vmatprep.subr.bf16.mxu0 0
        %587 = vmatpush1.bf16.msra.mxu0 0
        %588 = vmatprep.subr.bf16.mxu0 0
        %589 = vmatpush1.bf16.msra.mxu0 0
        %590 = vmatprep.subr.bf16.mxu0 0
        %591 = vmatpush1.bf16.msra.mxu0 0
        %592 = vmatprep.subr.bf16.mxu0 0
        %593 = vmatpush1.bf16.msra.mxu0 0
        %594 = vmatprep.subr.bf16.mxu0 0
        %595 = vmatpush1.bf16.msra.mxu0 0
        %596 = vmatprep.subr.bf16.mxu0 0
        %597 = vmatpush1.bf16.msra.mxu0 %v578
        %598 = vmatprep.subr.bf16.mxu0 0
        %599 = vmatpush1.bf16.msra.mxu0 %v577
        %600 = vmatprep.subr.bf16.mxu0 0
        %601 = vmatpush2.bf16.msra.mxu0 0
        %602 = vmatprep.subr.bf16.mxu0 0
        %603 = vmatpush2.bf16.msra.mxu0 0
        %604 = vmatprep.subr.bf16.mxu0 0
        %605 = vmatpush2.bf16.msra.mxu0 0
        %606 = vmatprep.subr.bf16.mxu0 0
        %607 = vmatpush2.bf16.msra.mxu0 0
        %608 = vmatprep.subr.bf16.mxu0 0
        %609 = vmatpush2.bf16.msra.mxu0 0
        %610 = vmatprep.subr.bf16.mxu0 0
        %611 = vmatpush2.bf16.msra.mxu0 0
        %612 = vmatprep.subr.bf16.mxu0 0
        %613 = vmatpush2.bf16.msra.mxu0 0
        %614 = vmatprep.subr.bf16.mxu0 0
        %615 = vmatpush2.bf16.msra.mxu0 0
        %616 = vmatprep.mubr.bf16.mxu0 0
        %617 = vmatmul.mubr.bf16.gmra.mxu0 %v582
        %v618 = vpop.f32.mrf.mxu0
        %v619 = vadd.f32 0.0, %v618
        %v620 = vpop.f32.mrf.mxu0
        %v621 = vpop.f32.mrf.mxu0
        %v622 = vpop.f32.mrf.mxu0
        %623 = vdwg.mxu0
        %v624 = vadd.f32 %v560, %v619
        %s625 = scalar_lea.vmem [#allocation2], 64
        %v626 = vld [vmem:[%s625] sm:$0xf]
        %v627 = vld [vmem:[%s625 + $0x4] sm:$0xf]
        %v628 = vld [vmem:[%s625 + $0x8] sm:$0xf]
        %v629 = vld [vmem:[%s625 + $0xc] sm:$0xf]
        %v630 = vrot.slane %v380, 2
        %v635 = vunpack.c.l.b16 %v626
        %v636 = vunpack.c.l.b16 %v627
        %v637 = vunpack.c.l.b16 %v628
        %v638 = vunpack.c.l.b16 %v629
        %v639 = vpack.c.b16 %v636, %v635
        %v640 = vpack.c.b16 %v638, %v637
        %v644 = vsel %vm400, %v630, 0
        %646 = vmatprep.subr.bf16.mxu0 0
        %647 = vmatpush1.bf16.msra.mxu0 0
        %648 = vmatprep.subr.bf16.mxu0 0
        %649 = vmatpush1.bf16.msra.mxu0 0
        %650 = vmatprep.subr.bf16.mxu0 0
        %651 = vmatpush1.bf16.msra.mxu0 0
        %652 = vmatprep.subr.bf16.mxu0 0
        %653 = vmatpush1.bf16.msra.mxu0 0
        %654 = vmatprep.subr.bf16.mxu0 0
        %655 = vmatpush1.bf16.msra.mxu0 0
        %656 = vmatprep.subr.bf16.mxu0 0
        %657 = vmatpush1.bf16.msra.mxu0 0
        %658 = vmatprep.subr.bf16.mxu0 0
        %659 = vmatpush1.bf16.msra.mxu0 %v640
        %660 = vmatprep.subr.bf16.mxu0 0
        %661 = vmatpush1.bf16.msra.mxu0 %v639
        %662 = vmatprep.subr.bf16.mxu0 0
        %663 = vmatpush2.bf16.msra.mxu0 0
        %664 = vmatprep.subr.bf16.mxu0 0
        %665 = vmatpush2.bf16.msra.mxu0 0
        %666 = vmatprep.subr.bf16.mxu0 0
        %667 = vmatpush2.bf16.msra.mxu0 0
        %668 = vmatprep.subr.bf16.mxu0 0
        %669 = vmatpush2.bf16.msra.mxu0 0
        %670 = vmatprep.subr.bf16.mxu0 0
        %671 = vmatpush2.bf16.msra.mxu0 0
        %672 = vmatprep.subr.bf16.mxu0 0
        %673 = vmatpush2.bf16.msra.mxu0 0
        %674 = vmatprep.subr.bf16.mxu0 0
        %675 = vmatpush2.bf16.msra.mxu0 0
        %676 = vmatprep.subr.bf16.mxu0 0
        %677 = vmatpush2.bf16.msra.mxu0 0
        %678 = vmatprep.mubr.bf16.mxu0 0
        %679 = vmatmul.mubr.bf16.gmra.mxu0 %v644
        %v680 = vpop.f32.mrf.mxu0
        %v681 = vadd.f32 0.0, %v680
        %v682 = vpop.f32.mrf.mxu0
        %v683 = vpop.f32.mrf.mxu0
        %v684 = vpop.f32.mrf.mxu0
        %685 = vdwg.mxu0
        %v686 = vadd.f32 %v624, %v681
        %v687 = vld [vmem:[%s3] sm:$0x1]
        %v689 = vlaneseq
        %v690 = vshrl.u32 %v689, 7
        %v691 = vsub.s32 0, %v690
        %v692 = vrot.slane %v687, %v691
        %v694 = vadd.f32 %v686, %v692
        %v695 = vmax.f32 %v694, 0.0
        %v696 = vld [vmem:[%s363] sm:$0xff]
        %698 = vset.pattern.permute.xlu0 0
        %699 = vperm.xlu0 %698, %v696
        %v700 = vpop.permute.xlu0 %699
        %v702 = vmul.f32 %v695, %v700
        %v703 = vrot.slane %v702, 4
        %v704 = vadd.f32 %v702, %v703
        %v705 = vrot.slane %v704, 2
        %v706 = vadd.f32 %v704, %v705
        %v707 = vrot.slane %v706, 1
        %v708 = vadd.f32 %v706, %v707
        %vm709 = vcmask 7168
        %v710 = vsel %vm709, %v696, 0.0
        %v711 = vrot.slane %v710, 4
        %v712 = vadd.f32 %v710, %v711
        %v713 = vrot.slane %v712, 2
        %v714 = vadd.f32 %v712, %v713
        %v715 = vrot.slane %v714, 1
        %v716 = vadd.f32 %v714, %v715
        %v717 = vpack.c.bf16 %v708, %v708
        %v718 = vld [vmem:[#allocation5] sm:$0xf]
        %v719 = vld [vmem:[#allocation5 + $0x4] sm:$0xf]
        %v720 = vld [vmem:[#allocation5 + $0x8] sm:$0xf]
        %v721 = vld [vmem:[#allocation5 + $0xc] sm:$0xf]
        %v722 = vld [vmem:[#allocation5 + $0x10] sm:$0xf]
        %v723 = vld [vmem:[#allocation5 + $0x14] sm:$0xf]
        %v724 = vld [vmem:[#allocation5 + $0x18] sm:$0xf]
        %v725 = vld [vmem:[#allocation5 + $0x1c] sm:$0xf]
        %v726 = vld [vmem:[#allocation5 + $0x20] sm:$0xf]
        %v727 = vld [vmem:[#allocation5 + $0x24] sm:$0xf]
        %v728 = vld [vmem:[#allocation5 + $0x28] sm:$0xf]
        %v729 = vld [vmem:[#allocation5 + $0x2c] sm:$0xf]
        %v730 = vld [vmem:[#allocation5 + $0x30] sm:$0xf]
        %v731 = vld [vmem:[#allocation5 + $0x34] sm:$0xf]
        %v732 = vld [vmem:[#allocation5 + $0x38] sm:$0xf]
        %v733 = vld [vmem:[#allocation5 + $0x3c] sm:$0xf]
        %v734 = vld [vmem:[%s5] sm:$0x1]
        %736 = vset.pattern.permute.xlu0 0
        %737 = vperm.xlu0 %736, %v716
        %v738 = vpop.permute.xlu0 %737
        %v740 = vmul.f32 %v734, %v738
        %v757 = vunpack.c.l.b16 %v718
        %v758 = vunpack.c.l.b16 %v719
        %v759 = vunpack.c.l.b16 %v720
        %v760 = vunpack.c.l.b16 %v721
        %v761 = vunpack.c.l.b16 %v722
        %v762 = vunpack.c.l.b16 %v723
        %v763 = vunpack.c.l.b16 %v724
        %v764 = vunpack.c.l.b16 %v725
        %v765 = vunpack.c.l.b16 %v726
        %v766 = vunpack.c.l.b16 %v727
        %v767 = vunpack.c.l.b16 %v728
        %v768 = vunpack.c.l.b16 %v729
        %v769 = vunpack.c.l.b16 %v730
        %v770 = vunpack.c.l.b16 %v731
        %v771 = vunpack.c.l.b16 %v732
        %v772 = vunpack.c.l.b16 %v733
        %v773 = vpack.c.b16 %v758, %v757
        %v774 = vpack.c.b16 %v760, %v759
        %v775 = vpack.c.b16 %v762, %v761
        %v776 = vpack.c.b16 %v764, %v763
        %v777 = vpack.c.b16 %v766, %v765
        %v778 = vpack.c.b16 %v768, %v767
        %v779 = vpack.c.b16 %v770, %v769
        %v780 = vpack.c.b16 %v772, %v771
        %789 = vmatprep.subr.bf16.mxu0 0
        %790 = vmatpush1.bf16.msra.mxu0 %v780
        %791 = vmatprep.subr.bf16.mxu0 0
        %792 = vmatpush1.bf16.msra.mxu0 %v779
        %793 = vmatprep.subr.bf16.mxu0 0
        %794 = vmatpush1.bf16.msra.mxu0 %v778
        %795 = vmatprep.subr.bf16.mxu0 0
        %796 = vmatpush1.bf16.msra.mxu0 %v777
        %797 = vmatprep.subr.bf16.mxu0 0
        %798 = vmatpush1.bf16.msra.mxu0 %v776
        %799 = vmatprep.subr.bf16.mxu0 0
        %800 = vmatpush1.bf16.msra.mxu0 %v775
        %801 = vmatprep.subr.bf16.mxu0 0
        %802 = vmatpush1.bf16.msra.mxu0 %v774
        %803 = vmatprep.subr.bf16.mxu0 0
        %804 = vmatpush1.bf16.msra.mxu0 %v773
        %805 = vmatprep.subr.bf16.mxu0 0
        %806 = vmatpush2.bf16.msra.mxu0 0
        %807 = vmatprep.subr.bf16.mxu0 0
        %808 = vmatpush2.bf16.msra.mxu0 0
        %809 = vmatprep.subr.bf16.mxu0 0
        %810 = vmatpush2.bf16.msra.mxu0 0
        %811 = vmatprep.subr.bf16.mxu0 0
        %812 = vmatpush2.bf16.msra.mxu0 0
        %813 = vmatprep.subr.bf16.mxu0 0
        %814 = vmatpush2.bf16.msra.mxu0 0
        %815 = vmatprep.subr.bf16.mxu0 0
        %816 = vmatpush2.bf16.msra.mxu0 0
        %817 = vmatprep.subr.bf16.mxu0 0
        %818 = vmatpush2.bf16.msra.mxu0 0
        %819 = vmatprep.subr.bf16.mxu0 0
        %820 = vmatpush2.bf16.msra.mxu0 0
        %821 = vmatprep.mubr.bf16.mxu0 0
        %822 = vmatmul.mubr.bf16.gmra.mxu0 %v717
        %v823 = vpop.f32.mrf.mxu0
        %v824 = vadd.f32 %v740, %v823
        %v825 = vpop.f32.mrf.mxu0
        %v826 = vpop.f32.mrf.mxu0
        %v827 = vpop.f32.mrf.mxu0
        %828 = vdwg.mxu0
        %v829 = vpack.c.bf16 %v824, %v824
        %v830 = vld [vmem:[#allocation7] sm:$0xf]
        %v831 = vld [vmem:[#allocation7 + $0x4] sm:$0xf]
        %v832 = vld [vmem:[#allocation7 + $0x8] sm:$0xf]
        %v833 = vld [vmem:[#allocation7 + $0xc] sm:$0xf]
        %v834 = vld [vmem:[#allocation7 + $0x10] sm:$0xf]
        %v835 = vld [vmem:[#allocation7 + $0x14] sm:$0xf]
        %v836 = vld [vmem:[#allocation7 + $0x18] sm:$0xf]
        %v837 = vld [vmem:[#allocation7 + $0x1c] sm:$0xf]
        %v838 = vld [vmem:[#allocation7 + $0x20] sm:$0xf]
        %v839 = vld [vmem:[#allocation7 + $0x24] sm:$0xf]
        %v840 = vld [vmem:[#allocation7 + $0x28] sm:$0xf]
        %v841 = vld [vmem:[#allocation7 + $0x2c] sm:$0xf]
        %v842 = vld [vmem:[#allocation7 + $0x30] sm:$0xf]
        %v843 = vld [vmem:[#allocation7 + $0x34] sm:$0xf]
        %v844 = vld [vmem:[#allocation7 + $0x38] sm:$0xf]
        %v845 = vld [vmem:[#allocation7 + $0x3c] sm:$0xf]
        %v846 = vld [vmem:[%s7] sm:$0x1]
        %v863 = vunpack.c.l.b16 %v830
        %v864 = vunpack.c.l.b16 %v831
        %v865 = vunpack.c.l.b16 %v832
        %v866 = vunpack.c.l.b16 %v833
        %v867 = vunpack.c.l.b16 %v834
        %v868 = vunpack.c.l.b16 %v835
        %v869 = vunpack.c.l.b16 %v836
        %v870 = vunpack.c.l.b16 %v837
        %v871 = vunpack.c.l.b16 %v838
        %v872 = vunpack.c.l.b16 %v839
        %v873 = vunpack.c.l.b16 %v840
        %v874 = vunpack.c.l.b16 %v841
        %v875 = vunpack.c.l.b16 %v842
        %v876 = vunpack.c.l.b16 %v843
        %v877 = vunpack.c.l.b16 %v844
        %v878 = vunpack.c.l.b16 %v845
        %v879 = vpack.c.b16 %v864, %v863
        %v880 = vpack.c.b16 %v866, %v865
        %v881 = vpack.c.b16 %v868, %v867
        %v882 = vpack.c.b16 %v870, %v869
        %v883 = vpack.c.b16 %v872, %v871
        %v884 = vpack.c.b16 %v874, %v873
        %v885 = vpack.c.b16 %v876, %v875
        %v886 = vpack.c.b16 %v878, %v877
        %895 = vmatprep.subr.bf16.mxu0 0
        %896 = vmatpush1.bf16.msra.mxu0 %v886
        %897 = vmatprep.subr.bf16.mxu0 0
        %898 = vmatpush1.bf16.msra.mxu0 %v885
        %899 = vmatprep.subr.bf16.mxu0 0
        %900 = vmatpush1.bf16.msra.mxu0 %v884
        %901 = vmatprep.subr.bf16.mxu0 0
        %902 = vmatpush1.bf16.msra.mxu0 %v883
        %903 = vmatprep.subr.bf16.mxu0 0
        %904 = vmatpush1.bf16.msra.mxu0 %v882
        %905 = vmatprep.subr.bf16.mxu0 0
        %906 = vmatpush1.bf16.msra.mxu0 %v881
        %907 = vmatprep.subr.bf16.mxu0 0
        %908 = vmatpush1.bf16.msra.mxu0 %v880
        %909 = vmatprep.subr.bf16.mxu0 0
        %910 = vmatpush1.bf16.msra.mxu0 %v879
        %911 = vmatprep.subr.bf16.mxu0 0
        %912 = vmatpush2.bf16.msra.mxu0 0
        %913 = vmatprep.subr.bf16.mxu0 0
        %914 = vmatpush2.bf16.msra.mxu0 0
        %915 = vmatprep.subr.bf16.mxu0 0
        %916 = vmatpush2.bf16.msra.mxu0 0
        %917 = vmatprep.subr.bf16.mxu0 0
        %918 = vmatpush2.bf16.msra.mxu0 0
        %919 = vmatprep.subr.bf16.mxu0 0
        %920 = vmatpush2.bf16.msra.mxu0 0
        %921 = vmatprep.subr.bf16.mxu0 0
        %922 = vmatpush2.bf16.msra.mxu0 0
        %923 = vmatprep.subr.bf16.mxu0 0
        %924 = vmatpush2.bf16.msra.mxu0 0
        %925 = vmatprep.subr.bf16.mxu0 0
        %926 = vmatpush2.bf16.msra.mxu0 0
        %927 = vmatprep.mubr.bf16.mxu0 0
        %928 = vmatmul.mubr.bf16.gmra.mxu0 %v829
        %v929 = vpop.f32.mrf.mxu0
        %v930 = vadd.f32 %v846, %v929
        %v931 = vpop.f32.mrf.mxu0
        %v932 = vpop.f32.mrf.mxu0
        %v933 = vpop.f32.mrf.mxu0
        %934 = vdwg.mxu0
        %935 = vst [vmem:[%s354] sm:$0x1] %v930
        %s936 = sand.u32 %s210, 1
        %s937 = scalar_lea.sflag [#allocation4], %s936
        %s938 = sand.u32 %s210, 1
        %s939 = scalar_lea.vmem [#allocation8], %s938
        // Predicated region
        $region65: #{tpu_custom_call.1} parent=51 // pred_check
          %p940 = pneg %p220
        $region66: #{tpu_custom_call.1} parent=51 // pred_check_branch
          %942 = sbr.rel (%p940) target = $region68
        $region67: #{tpu_custom_call.1} parent=51 // pred_region
          %s944 = ssub.s32 16, 16
          %945 = vsyncadd %s937, %s944
          %s946 = smul.addr %s24, 16
          %s947 = scalar_lea.hbm %s8, %s946
          %s949 = sshll.u32 %s939, 4
          %s950 = int_to_ptr.vmem [resolvable:$true] %s949
          %952 = dma.vmem_to_hbm [thread:$0]  %s950, 16, %s947, %s937
        $region68: #{tpu_custom_call.1} parent=51 // pred_fallthru
          _
      $region52: #{tpu_custom_call.1} parent=5 // pred_fallthru
        _
      %p953 = scmp.le.s32.totalorder 2, %s19
      // Predicated region
      $region69: #{tpu_custom_call.1} parent=5 // pred_check
        %p954 = pneg %p953
      $region70: #{tpu_custom_call.1} parent=5 // pred_check_branch
        %956 = sbr.rel (%p954) target = $region72
      $region71: #{tpu_custom_call.1} parent=5 // pred_region
        %s957 = ssub.s32 %s19, 2
        // Predicated region
        $region73: #{tpu_custom_call.1} parent=71 // pred_check
          %p958 = pneg %p226
        $region74: #{tpu_custom_call.1} parent=71 // pred_check_branch
          %960 = sbr.rel (%p958) target = $region76
        $region75: #{tpu_custom_call.1} parent=71 // pred_region
          %s961 = sand.u32 %s211, 1
          %s962 = scalar_lea.sflag [#allocation4], %s961
          %s963 = sand.u32 %s211, 1
          %s964 = scalar_lea.vmem [#allocation8], %s963
          %965 = dma.done %s962, 16
        $region76: #{tpu_custom_call.1} parent=71 // pred_fallthru
          _
      $region72: #{tpu_custom_call.1} parent=5 // pred_fallthru
        _
    $region6: #{tpu_custom_call.1} parent=1 // loop_footer
      %s23 = sadd.s32 1, %s19
    $region7: #{tpu_custom_call.1} parent=1 // loop_footer_branch
      %18 = sbr.rel target = $region3
    $region8: #{tpu_custom_call.1} parent=1 // loop_exit
      _
    %966 = vsyncpa [#allocation3], 1
    %s967 = scalar_lea.sflag [#allocation3], 1
    %968 = vsyncpa %s967, 1
    %969 = vsyncpa [#allocation6], 1
    %970 = vsyncpa [#allocation4], 1
    %s971 = scalar_lea.sflag [#allocation4], 1
    %972 = vsyncpa %s971, 1

// kernel: tpu_custom_call.1
$region0: #{tpu_custom_call.1}
  #allocation0 [shape = 'u32[]', space=smem, size = 0x4, offset = 0x4, fixed_abs, tag = 'smem constant byte address 0x4 - core index']
  #allocation1 [shape = 'u32[144,128]{1,0:T(1,128)}', space=vmem, size = 0x12000, scoped, tag = 'internal scratch']
  %s0 = inlined_call_operand.vmem [shape: bf16[2,12,32], index: 0, kind: input, shape index: {}]
  %s1 = inlined_call_operand.vmem [shape: f32[2,8,1], index: 1, kind: input, shape index: {}]
  %s2 = inlined_call_operand.hbm [shape: bf16[5,32,128], index: 2, kind: input, shape index: {}]
  %s3 = inlined_call_operand.vmem [shape: f32[1,128], index: 3, kind: input, shape index: {}]
  %s4 = inlined_call_operand.hbm [shape: bf16[128,128], index: 4, kind: input, shape index: {}]
  %s5 = inlined_call_operand.vmem [shape: f32[1,128], index: 5, kind: input, shape index: {}]
  %s6 = inlined_call_operand.hbm [shape: bf16[128,128], index: 6, kind: input, shape index: {}]
  %s7 = inlined_call_operand.vmem [shape: f32[1,128], index: 7, kind: input, shape index: {}]
  %s8 = inlined_call_operand.hbm [shape: f32[2,1,128], index: 8, kind: output, shape index: {}]
  %s9 = sld [smem:[#allocation0]]
  $region77: #{tpu_custom_call.1} parent=0
    _
  %s11 = ssub.s32 1, %s9
  %s12 = scalar_select 0, %s11, %s9
  $region1: #{tpu_custom_call.1} parent=0
    #allocation2 [shape = 'u8[40960]{0}', space=vmem, size = 0xa000, scoped, tag = 'input window, operand 2, single buffered']
    #allocation3 [shape = 's32[2]{0}', space=sflag, size = 0x8, scoped, tag = 'scoped memory for tpu_custom_call.1']
    #allocation4 [shape = 's32[2]{0}', space=sflag, size = 0x8, scoped, tag = 'scoped memory for tpu_custom_call.1']
    #allocation5 [shape = 'u8[32768]{0}', space=vmem, size = 0x8000, scoped, tag = 'input window, operand 4, single buffered']
    #allocation6 [shape = 's32[1]{0}', space=sflag, size = 0x4, scoped, tag = 'scoped memory for tpu_custom_call.1']
    #allocation7 [shape = 'u8[32768]{0}', space=vmem, size = 0x8000, scoped, tag = 'input window, operand 6, single buffered']
    #allocation8 [shape = 'u8[1024]{0}', space=vmem, size = 0x400, scoped, tag = 'output window, operand 0']
    %13 = vsyncpa [#allocation3], 0
    %14 = vsyncpa [#allocation6], 0
    %15 = vsyncpa [#allocation4], 0
    %s16 = scalar_lea.sflag [#allocation4], 1
    %17 = vsyncpa %s16, 0
    loop: start=0, step=1, limit=4
    $region2: #{tpu_custom_call.1} parent=1 // loop_pre_header
      _
    $region3: #{tpu_custom_call.1} parent=1 // loop_header
      %s19 = sphi 0, %s23
      %p20 = scmp.ge.s32.totalorder %s19, 4
      %s29 = sphi 0, %s31
      %s32 = sphi 0, %s29
      %s33 = sphi 0, %s32
      %s49 = sphi 0, %s33
      %s55 = sphi 0, %s57
      %s58 = sphi 0, %s55
      %s59 = sphi 0, %s58
      %s75 = sphi 0, %s59
      %s79 = sphi 0, %s79
      %s81 = sphi 0, %s79
      %s82 = sphi 0, %s81
      %s96 = sphi 0, %s82
      %s100 = sphi 0, %s100
      %s102 = sphi 0, %s100
      %s103 = sphi 0, %s102
      %s117 = sphi 0, %s103
      %s121 = sphi 0, %s121
      %s123 = sphi 0, %s121
      %s124 = sphi 0, %s123
      %s138 = sphi 0, %s124
      %s142 = sphi 0, %s142
      %s144 = sphi 0, %s142
      %s145 = sphi 0, %s144
      %s159 = sphi 0, %s145
      %s163 = sphi 0, %s163
      %s165 = sphi 0, %s163
      %s166 = sphi 0, %s165
      %s180 = sphi 0, %s166
      %s184 = sphi 0, %s184
      %s186 = sphi 0, %s184
      %s187 = sphi 0, %s186
      %s201 = sphi 0, %s187
      %s207 = sphi 0, %s209
      %s210 = sphi 0, %s207
      %s211 = sphi 0, %s210
      %s227 = sphi 0, %s211
    $region4: #{tpu_custom_call.1} parent=1 // loop_header_branch
      %22 = sbr.rel (%p20) target = $region8
    $region5: #{tpu_custom_call.1} parent=1 // loop_body
      %s24 = ssub.s32 %s19, 1
      %s25 = ssub.s32 %s19, 2
      %s26 = sadd.s32 %s19, 1
      %s27 = ssub.s32 %s19, %s26
      %p28 = scmp.eq.s32.totalorder %s27, 0
      %s30 = sadd.s32 %s29, 1
      %s31 = scalar_select %p28, %s29, %s30
      %p34 = pneg %p28
      %p35 = scmp.eq.s32.totalorder %s19, 1
      %p36 = por %p34, %p35
      %p37 = scmp.ne.s32.totalorder %s29, %s32
      %p38 = scmp.eq.s32.totalorder %s19, 0
      %p39 = por %p37, %p38
      %p40 = scmp.ne.s32.totalorder %s29, %s32
      %p41 = scmp.eq.s32.totalorder %s24, 1
      %p42 = por %p40, %p41
      %p43 = scmp.ne.s32.totalorder %s32, %s33
      %p44 = scmp.eq.s32.totalorder %s24, 0
      %p45 = por %p43, %p44
      %p46 = scmp.ne.s32.totalorder %s32, %s33
      %p47 = scmp.eq.s32.totalorder %s25, 1
      %p48 = por %p46, %p47
      %p50 = scmp.ne.s32.totalorder %s33, %s49
      %p51 = scmp.eq.s32.totalorder %s25, 0
      %p52 = por %p50, %p51
      %s53 = ssub.s32 %s19, %s26
      %p54 = scmp.eq.s32.totalorder %s53, 0
      %s56 = sadd.s32 %s55, 1
      %s57 = scalar_select %p54, %s55, %s56
      %p60 = pneg %p54
      %p61 = scmp.eq.s32.totalorder %s19, 1
      %p62 = por %p60, %p61
      %p63 = scmp.ne.s32.totalorder %s55, %s58
      %p64 = scmp.eq.s32.totalorder %s19, 0
      %p65 = por %p63, %p64
      %p66 = scmp.ne.s32.totalorder %s55, %s58
      %p67 = scmp.eq.s32.totalorder %s24, 1
      %p68 = por %p66, %p67
      %p69 = scmp.ne.s32.totalorder %s58, %s59
      %p70 = scmp.eq.s32.totalorder %s24, 0
      %p71 = por %p69, %p70
      %p72 = scmp.ne.s32.totalorder %s58, %s59
      %p73 = scmp.eq.s32.totalorder %s25, 1
      %p74 = por %p72, %p73
      %p76 = scmp.ne.s32.totalorder %s59, %s75
      %p77 = scmp.eq.s32.totalorder %s25, 0
      %p78 = por %p76, %p77
      %s80 = sadd.s32 %s79, 1
      %p83 = scmp.eq.s32.totalorder %s19, 1
      %p84 = scmp.ne.s32.totalorder %s79, %s81
      %p85 = scmp.eq.s32.totalorder %s19, 0
      %p86 = por %p84, %p85
      %p87 = scmp.ne.s32.totalorder %s79, %s81
      %p88 = scmp.eq.s32.totalorder %s24, 1
      %p89 = por %p87, %p88
      %p90 = scmp.ne.s32.totalorder %s81, %s82
      %p91 = scmp.eq.s32.totalorder %s24, 0
      %p92 = por %p90, %p91
      %p93 = scmp.ne.s32.totalorder %s81, %s82
      %p94 = scmp.eq.s32.totalorder %s25, 1
      %p95 = por %p93, %p94
      %p97 = scmp.ne.s32.totalorder %s82, %s96
      %p98 = scmp.eq.s32.totalorder %s25, 0
      %p99 = por %p97, %p98
      %s101 = sadd.s32 %s100, 1
      %p104 = scmp.eq.s32.totalorder %s19, 1
      %p105 = scmp.ne.s32.totalorder %s100, %s102
      %p106 = scmp.eq.s32.totalorder %s19, 0
      %p107 = por %p105, %p106
      %p108 = scmp.ne.s32.totalorder %s100, %s102
      %p109 = scmp.eq.s32.totalorder %s24, 1
      %p110 = por %p108, %p109
      %p111 = scmp.ne.s32.totalorder %s102, %s103
      %p112 = scmp.eq.s32.totalorder %s24, 0
      %p113 = por %p111, %p112
      %p114 = scmp.ne.s32.totalorder %s102, %s103
      %p115 = scmp.eq.s32.totalorder %s25, 1
      %p116 = por %p114, %p115
      %p118 = scmp.ne.s32.totalorder %s103, %s117
      %p119 = scmp.eq.s32.totalorder %s25, 0
      %p120 = por %p118, %p119
      %s122 = sadd.s32 %s121, 1
      %p125 = scmp.eq.s32.totalorder %s19, 1
      %p126 = scmp.ne.s32.totalorder %s121, %s123
      %p127 = scmp.eq.s32.totalorder %s19, 0
      %p128 = por %p126, %p127
      %p129 = scmp.ne.s32.totalorder %s121, %s123
      %p130 = scmp.eq.s32.totalorder %s24, 1
      %p131 = por %p129, %p130
      %p132 = scmp.ne.s32.totalorder %s123, %s124
      %p133 = scmp.eq.s32.totalorder %s24, 0
      %p134 = por %p132, %p133
      %p135 = scmp.ne.s32.totalorder %s123, %s124
      %p136 = scmp.eq.s32.totalorder %s25, 1
      %p137 = por %p135, %p136
      %p139 = scmp.ne.s32.totalorder %s124, %s138
      %p140 = scmp.eq.s32.totalorder %s25, 0
      %p141 = por %p139, %p140
      %s143 = sadd.s32 %s142, 1
      %p146 = scmp.eq.s32.totalorder %s19, 1
      %p147 = scmp.ne.s32.totalorder %s142, %s144
      %p148 = scmp.eq.s32.totalorder %s19, 0
      %p149 = por %p147, %p148
      %p150 = scmp.ne.s32.totalorder %s142, %s144
      %p151 = scmp.eq.s32.totalorder %s24, 1
      %p152 = por %p150, %p151
      %p153 = scmp.ne.s32.totalorder %s144, %s145
      %p154 = scmp.eq.s32.totalorder %s24, 0
      %p155 = por %p153, %p154
      %p156 = scmp.ne.s32.totalorder %s144, %s145
      %p157 = scmp.eq.s32.totalorder %s25, 1
      %p158 = por %p156, %p157
      %p160 = scmp.ne.s32.totalorder %s145, %s159
      %p161 = scmp.eq.s32.totalorder %s25, 0
      %p162 = por %p160, %p161
      %s164 = sadd.s32 %s163, 1
      %p167 = scmp.eq.s32.totalorder %s19, 1
      %p168 = scmp.ne.s32.totalorder %s163, %s165
      %p169 = scmp.eq.s32.totalorder %s19, 0
      %p170 = por %p168, %p169
      %p171 = scmp.ne.s32.totalorder %s163, %s165
      %p172 = scmp.eq.s32.totalorder %s24, 1
      %p173 = por %p171, %p172
      %p174 = scmp.ne.s32.totalorder %s165, %s166
      %p175 = scmp.eq.s32.totalorder %s24, 0
      %p176 = por %p174, %p175
      %p177 = scmp.ne.s32.totalorder %s165, %s166
      %p178 = scmp.eq.s32.totalorder %s25, 1
      %p179 = por %p177, %p178
      %p181 = scmp.ne.s32.totalorder %s166, %s180
      %p182 = scmp.eq.s32.totalorder %s25, 0
      %p183 = por %p181, %p182
      %s185 = sadd.s32 %s184, 1
      %p188 = scmp.eq.s32.totalorder %s19, 1
      %p189 = scmp.ne.s32.totalorder %s184, %s186
      %p190 = scmp.eq.s32.totalorder %s19, 0
      %p191 = por %p189, %p190
      %p192 = scmp.ne.s32.totalorder %s184, %s186
      %p193 = scmp.eq.s32.totalorder %s24, 1
      %p194 = por %p192, %p193
      %p195 = scmp.ne.s32.totalorder %s186, %s187
      %p196 = scmp.eq.s32.totalorder %s24, 0
      %p197 = por %p195, %p196
      %p198 = scmp.ne.s32.totalorder %s186, %s187
      %p199 = scmp.eq.s32.totalorder %s25, 1
      %p200 = por %p198, %p199
      %p202 = scmp.ne.s32.totalorder %s187, %s201
      %p203 = scmp.eq.s32.totalorder %s25, 0
      %p204 = por %p202, %p203
      %s205 = ssub.s32 %s19, %s26
      %p206 = scmp.eq.s32.totalorder %s205, 0
      %s208 = sadd.s32 %s207, 1
      %s209 = scalar_select %p206, %s207, %s208
      %p212 = pneg %p206
      %p213 = scmp.eq.s32.totalorder %s19, 1
      %p214 = por %p212, %p213
      %p215 = scmp.ne.s32.totalorder %s207, %s210
      %p216 = scmp.eq.s32.totalorder %s19, 0
      %p217 = por %p215, %p216
      %p218 = scmp.ne.s32.totalorder %s207, %s210
      %p219 = scmp.eq.s32.totalorder %s24, 1
      %p220 = por %p218, %p219
      %p221 = scmp.ne.s32.totalorder %s210, %s211
      %p222 = scmp.eq.s32.totalorder %s24, 0
      %p223 = por %p221, %p222
      %p224 = scmp.ne.s32.totalorder %s210, %s211
      %p225 = scmp.eq.s32.totalorder %s25, 1
      %p226 = por %p224, %p225
      %p228 = scmp.ne.s32.totalorder %s211, %s227
      %p229 = scmp.eq.s32.totalorder %s25, 0
      %p230 = por %p228, %p229
      %p231 = scmp.le.s32.totalorder 1, %s19
      %p232 = scmp.lt.s32.totalorder %s19, 3
      %p233 = pnand %p231, %p232
      %p234 = pneg %p233
      // Predicated region
      $region9: #{tpu_custom_call.1} parent=5 // pred_check
        _
      $region10: #{tpu_custom_call.1} parent=5 // pred_check_branch
        %236 = sbr.rel (%p233) target = $region12
      $region11: #{tpu_custom_call.1} parent=5 // pred_region
        %s237 = ssub.s32 %s19, 1
        // Predicated region
        $region13: #{tpu_custom_call.1} parent=11 // pred_check
          %p238 = pneg %p92
        $region14: #{tpu_custom_call.1} parent=11 // pred_check_branch
          %240 = sbr.rel (%p238) target = $region16
        $region15: #{tpu_custom_call.1} parent=11 // pred_region
          %s242 = ssub.s32 1280, 1280
          %243 = vsyncadd [#allocation3], %s242
          %s244 = sshll.u32 [#allocation2], 4
          %s245 = int_to_ptr.vmem [resolvable:$true] %s244
          %250 = dma.hbm_to_vmem [thread:$0]  %s2, 1280, %s245, [#allocation3], 64, 64, 4
        $region16: #{tpu_custom_call.1} parent=11 // pred_fallthru
          _
        // Predicated region
        $region17: #{tpu_custom_call.1} parent=11 // pred_check
          %p251 = pneg %p113
        $region18: #{tpu_custom_call.1} parent=11 // pred_check_branch
          %253 = sbr.rel (%p251) target = $region20
        $region19: #{tpu_custom_call.1} parent=11 // pred_region
          _
        $region20: #{tpu_custom_call.1} parent=11 // pred_fallthru
          _
        // Predicated region
        $region21: #{tpu_custom_call.1} parent=11 // pred_check
          %p254 = pneg %p134
        $region22: #{tpu_custom_call.1} parent=11 // pred_check_branch
          %256 = sbr.rel (%p254) target = $region24
        $region23: #{tpu_custom_call.1} parent=11 // pred_region
          %s258 = ssub.s32 1024, 1024
          %259 = vsyncadd [#allocation6], %s258
          %s260 = sshll.u32 [#allocation5], 4
          %s261 = int_to_ptr.vmem [resolvable:$true] %s260
          %266 = dma.hbm_to_vmem [thread:$0]  %s4, 1024, %s261, [#allocation6], 64, 64, 4
        $region24: #{tpu_custom_call.1} parent=11 // pred_fallthru
          _
        // Predicated region
        $region25: #{tpu_custom_call.1} parent=11 // pred_check
          %p267 = pneg %p155
        $region26: #{tpu_custom_call.1} parent=11 // pred_check_branch
          %269 = sbr.rel (%p267) target = $region28
        $region27: #{tpu_custom_call.1} parent=11 // pred_region
          _
        $region28: #{tpu_custom_call.1} parent=11 // pred_fallthru
          _
        // Predicated region
        $region29: #{tpu_custom_call.1} parent=11 // pred_check
          %p270 = pneg %p176
        $region30: #{tpu_custom_call.1} parent=11 // pred_check_branch
          %272 = sbr.rel (%p270) target = $region32
        $region31: #{tpu_custom_call.1} parent=11 // pred_region
          %s274 = ssub.s32 1024, 1024
          %275 = vsyncadd [#allocation6], %s274
          %s276 = sshll.u32 [#allocation7], 4
          %s277 = int_to_ptr.vmem [resolvable:$true] %s276
          %282 = dma.hbm_to_vmem [thread:$0]  %s6, 1024, %s277, [#allocation6], 64, 64, 4
        $region32: #{tpu_custom_call.1} parent=11 // pred_fallthru
          _
        // Predicated region
        $region33: #{tpu_custom_call.1} parent=11 // pred_check
          %p283 = pneg %p197
        $region34: #{tpu_custom_call.1} parent=11 // pred_check_branch
          %285 = sbr.rel (%p283) target = $region36
        $region35: #{tpu_custom_call.1} parent=11 // pred_region
          _
        $region36: #{tpu_custom_call.1} parent=11 // pred_fallthru
          _
      $region12: #{tpu_custom_call.1} parent=5 // pred_fallthru
        _
      %p286 = scmp.lt.s32.totalorder %s19, 2
      // Predicated region
      $region37: #{tpu_custom_call.1} parent=5 // pred_check
        %p287 = pneg %p286
      $region38: #{tpu_custom_call.1} parent=5 // pred_check_branch
        %289 = sbr.rel (%p287) target = $region40
      $region39: #{tpu_custom_call.1} parent=5 // pred_region
        // Predicated region
        $region41: #{tpu_custom_call.1} parent=39 // pred_check
          %p290 = pneg %p39
        $region42: #{tpu_custom_call.1} parent=39 // pred_check_branch
          %292 = sbr.rel (%p290) target = $region44
        $region43: #{tpu_custom_call.1} parent=39 // pred_region
          %p293 = scmp.lt.s32.totalorder %s19, 1
          %s294 = scalar_select %p293, %s19, 1
          %s295 = smul.addr %s294, 2
          %s296 = smul.addr %s295, 4
          %s297 = scalar_lea.vmem %s0, %s296
        $region44: #{tpu_custom_call.1} parent=39 // pred_fallthru
          _
        // Predicated region
        $region45: #{tpu_custom_call.1} parent=39 // pred_check
          %p298 = pneg %p65
        $region46: #{tpu_custom_call.1} parent=39 // pred_check_branch
          %300 = sbr.rel (%p298) target = $region48
        $region47: #{tpu_custom_call.1} parent=39 // pred_region
          %p301 = scmp.lt.s32.totalorder %s19, 1
          %s302 = scalar_select %p301, %s19, 1
          %s303 = smul.addr %s302, 8
          %s304 = scalar_lea.vmem %s1, %s303
        $region48: #{tpu_custom_call.1} parent=39 // pred_fallthru
          _
      $region40: #{tpu_custom_call.1} parent=5 // pred_fallthru
        _
      %p305 = scmp.le.s32.totalorder 1, %s19
      %p306 = scmp.lt.s32.totalorder %s19, 3
      %p307 = pnand %p305, %p306
      %p308 = pneg %p307
      // Predicated region
      $region49: #{tpu_custom_call.1} parent=5 // pred_check
        _
      $region50: #{tpu_custom_call.1} parent=5 // pred_check_branch
        %310 = sbr.rel (%p307) target = $region52
      $region51: #{tpu_custom_call.1} parent=5 // pred_region
        %s311 = ssub.s32 %s19, 1
        // Predicated region
        $region53: #{tpu_custom_call.1} parent=51 // pred_check
          %p312 = pneg %p92
        $region54: #{tpu_custom_call.1} parent=51 // pred_check_branch
          %314 = sbr.rel (%p312) target = $region56
        $region55: #{tpu_custom_call.1} parent=51 // pred_region
          %315 = dma.done [#allocation3], 1280
        $region56: #{tpu_custom_call.1} parent=51 // pred_fallthru
          _
        // Predicated region
        $region57: #{tpu_custom_call.1} parent=51 // pred_check
          %p316 = pneg %p134
        $region58: #{tpu_custom_call.1} parent=51 // pred_check_branch
          %318 = sbr.rel (%p316) target = $region60
        $region59: #{tpu_custom_call.1} parent=51 // pred_region
          %319 = dma.done [#allocation6], 1024
        $region60: #{tpu_custom_call.1} parent=51 // pred_fallthru
          _
        // Predicated region
        $region61: #{tpu_custom_call.1} parent=51 // pred_check
          %p320 = pneg %p176
        $region62: #{tpu_custom_call.1} parent=51 // pred_check_branch
          %322 = sbr.rel (%p320) target = $region64
        $region63: #{tpu_custom_call.1} parent=51 // pred_region
          %323 = dma.done [#allocation6], 1024
        $region64: #{tpu_custom_call.1} parent=51 // pred_fallthru
          _
        %p324 = scmp.lt.s32.totalorder %s24, 1
        %s325 = scalar_select %p324, %s24, 1
        %s326 = smul.addr %s325, 2
        %s327 = smul.addr %s326, 4
        %s328 = scalar_lea.vmem %s0, %s327
        %p329 = pneg %p45
        %p330 = pneg %p42
        %p331 = scmp.lt.s32.totalorder %s24, 1
        %s332 = scalar_select %p331, %s24, 1
        %s333 = smul.addr %s332, 8
        %s334 = scalar_lea.vmem %s1, %s333
        %p335 = pneg %p71
        %p336 = pneg %p68
        %p337 = pneg %p92
        %p338 = pneg %p89
        %p339 = pneg %p113
        %p340 = pneg %p110
        %p341 = pneg %p134
        %p342 = pneg %p131
        %p343 = pneg %p155
        %p344 = pneg %p152
        %p345 = pneg %p176
        %p346 = pneg %p173
        %p347 = pneg %p197
        %p348 = pneg %p194
        %p349 = pneg %p223
        %p350 = pneg %p220
        %s351 = sand.u32 %s210, 1
        %s352 = scalar_lea.sflag [#allocation4], %s351
        %s353 = sand.u32 %s210, 1
        %s354 = scalar_lea.vmem [#allocation8], %s353
        %p355 = scmp.lt.s32.totalorder %s24, 1
        %s356 = scalar_select %p355, %s24, 1
        %s357 = smul.addr %s356, 2
        %s358 = smul.addr %s357, 4
        %s359 = scalar_lea.vmem %s0, %s358
        %p360 = scmp.lt.s32.totalorder %s24, 1
        %s361 = scalar_select %p360, %s24, 1
        %s362 = smul.addr %s361, 8
        %s363 = scalar_lea.vmem %s1, %s362
        %v365 = vld [vmem:[%s359] sm:$0xf]
        %v366 = vld [vmem:[%s359 + $0x4] sm:$0x3]
        %v367 = vld [vmem:[#allocation2] sm:$0xf]
        %v368 = vld [vmem:[#allocation2 + $0x4] sm:$0xf]
        %v369 = vld [vmem:[#allocation2 + $0x8] sm:$0xf]
        %v370 = vld [vmem:[#allocation2 + $0xc] sm:$0xf]
        %s371 = scalar_lea.vmem [#allocation2], 16
        %v372 = vld [vmem:[%s371] sm:$0xf]
        %v373 = vld [vmem:[%s371 + $0x4] sm:$0xf]
        %v374 = vld [vmem:[%s371 + $0x8] sm:$0xf]
        %v375 = vld [vmem:[%s371 + $0xc] sm:$0xf]
        %v378 = vunpack.c.l.b16 %v365
        %v379 = vunpack.c.l.b16 %v366
        %v380 = vpack.c.b16 %v379, %v378
        %v382 = vshrl.u32 %v380, 16
        %v384 = vshll.u32 %v380, 16
        %v386 = vrot.slane %v384, 1
        %v387 = vor.u32 %v382, %v386
        %v392 = vunpack.c.l.b16 %v372
        %v393 = vunpack.c.l.b16 %v373
        %v394 = vunpack.c.l.b16 %v374
        %v395 = vunpack.c.l.b16 %v375
        %v396 = vpack.c.b16 %v393, %v392
        %v397 = vpack.c.b16 %v395, %v394
        %vm400 = vcmask 261120
        %v402 = vsel %vm400, %v387, 0
        %404 = vmatprep.subr.bf16.mxu0 0
        %405 = vmatpush1.bf16.msra.mxu0 0
        %406 = vmatprep.subr.bf16.mxu0 0
        %407 = vmatpush1.bf16.msra.mxu0 0
        %408 = vmatprep.subr.bf16.mxu0 0
        %409 = vmatpush1.bf16.msra.mxu0 0
        %410 = vmatprep.subr.bf16.mxu0 0
        %411 = vmatpush1.bf16.msra.mxu0 0
        %412 = vmatprep.subr.bf16.mxu0 0
        %413 = vmatpush1.bf16.msra.mxu0 0
        %414 = vmatprep.subr.bf16.mxu0 0
        %415 = vmatpush1.bf16.msra.mxu0 0
        %416 = vmatprep.subr.bf16.mxu0 0
        %417 = vmatpush1.bf16.msra.mxu0 %v397
        %418 = vmatprep.subr.bf16.mxu0 0
        %419 = vmatpush1.bf16.msra.mxu0 %v396
        %420 = vmatprep.subr.bf16.mxu0 0
        %421 = vmatpush2.bf16.msra.mxu0 0
        %422 = vmatprep.subr.bf16.mxu0 0
        %423 = vmatpush2.bf16.msra.mxu0 0
        %424 = vmatprep.subr.bf16.mxu0 0
        %425 = vmatpush2.bf16.msra.mxu0 0
        %426 = vmatprep.subr.bf16.mxu0 0
        %427 = vmatpush2.bf16.msra.mxu0 0
        %428 = vmatprep.subr.bf16.mxu0 0
        %429 = vmatpush2.bf16.msra.mxu0 0
        %430 = vmatprep.subr.bf16.mxu0 0
        %431 = vmatpush2.bf16.msra.mxu0 0
        %432 = vmatprep.subr.bf16.mxu0 0
        %433 = vmatpush2.bf16.msra.mxu0 0
        %434 = vmatprep.subr.bf16.mxu0 0
        %435 = vmatpush2.bf16.msra.mxu0 0
        %436 = vmatprep.mubr.bf16.mxu0 0
        %437 = vmatmul.mubr.bf16.gmra.mxu0 %v402
        %v438 = vpop.f32.mrf.mxu0
        %v439 = vadd.f32 0.0, %v438
        %v440 = vpop.f32.mrf.mxu0
        %v441 = vpop.f32.mrf.mxu0
        %v442 = vpop.f32.mrf.mxu0
        %443 = vdwg.mxu0
        %v448 = vunpack.c.l.b16 %v367
        %v449 = vunpack.c.l.b16 %v368
        %v450 = vunpack.c.l.b16 %v369
        %v451 = vunpack.c.l.b16 %v370
        %v452 = vpack.c.b16 %v449, %v448
        %v453 = vpack.c.b16 %v451, %v450
        %v457 = vsel %vm400, %v365, 0
        %459 = vmatprep.subr.bf16.mxu0 0
        %460 = vmatpush1.bf16.msra.mxu0 0
        %461 = vmatprep.subr.bf16.mxu0 0
        %462 = vmatpush1.bf16.msra.mxu0 0
        %463 = vmatprep.subr.bf16.mxu0 0
        %464 = vmatpush1.bf16.msra.mxu0 0
        %465 = vmatprep.subr.bf16.mxu0 0
        %466 = vmatpush1.bf16.msra.mxu0 0
        %467 = vmatprep.subr.bf16.mxu0 0
        %468 = vmatpush1.bf16.msra.mxu0 0
        %469 = vmatprep.subr.bf16.mxu0 0
        %470 = vmatpush1.bf16.msra.mxu0 0
        %471 = vmatprep.subr.bf16.mxu0 0
        %472 = vmatpush1.bf16.msra.mxu0 %v453
        %473 = vmatprep.subr.bf16.mxu0 0
        %474 = vmatpush1.bf16.msra.mxu0 %v452
        %475 = vmatprep.subr.bf16.mxu0 0
        %476 = vmatpush2.bf16.msra.mxu0 0
        %477 = vmatprep.subr.bf16.mxu0 0
        %478 = vmatpush2.bf16.msra.mxu0 0
        %479 = vmatprep.subr.bf16.mxu0 0
        %480 = vmatpush2.bf16.msra.mxu0 0
        %481 = vmatprep.subr.bf16.mxu0 0
        %482 = vmatpush2.bf16.msra.mxu0 0
        %483 = vmatprep.subr.bf16.mxu0 0
        %484 = vmatpush2.bf16.msra.mxu0 0
        %485 = vmatprep.subr.bf16.mxu0 0
        %486 = vmatpush2.bf16.msra.mxu0 0
        %487 = vmatprep.subr.bf16.mxu0 0
        %488 = vmatpush2.bf16.msra.mxu0 0
        %489 = vmatprep.subr.bf16.mxu0 0
        %490 = vmatpush2.bf16.msra.mxu0 0
        %491 = vmatprep.mubr.bf16.mxu0 0
        %492 = vmatmul.mubr.bf16.gmra.mxu0 %v457
        %v493 = vpop.f32.mrf.mxu0
        %v494 = vadd.f32 %v439, %v493
        %v495 = vpop.f32.mrf.mxu0
        %v496 = vpop.f32.mrf.mxu0
        %v497 = vpop.f32.mrf.mxu0
        %498 = vdwg.mxu0
        %s499 = scalar_lea.vmem [#allocation2], 32
        %v500 = vld [vmem:[%s499] sm:$0xf]
        %v501 = vld [vmem:[%s499 + $0x4] sm:$0xf]
        %v502 = vld [vmem:[%s499 + $0x8] sm:$0xf]
        %v503 = vld [vmem:[%s499 + $0xc] sm:$0xf]
        %v504 = vrot.slane %v380, 1
        %v509 = vunpack.c.l.b16 %v500
        %v510 = vunpack.c.l.b16 %v501
        %v511 = vunpack.c.l.b16 %v502
        %v512 = vunpack.c.l.b16 %v503
        %v513 = vpack.c.b16 %v510, %v509
        %v514 = vpack.c.b16 %v512, %v511
        %v518 = vsel %vm400, %v504, 0
        %520 = vmatprep.subr.bf16.mxu0 0
        %521 = vmatpush1.bf16.msra.mxu0 0
        %522 = vmatprep.subr.bf16.mxu0 0
        %523 = vmatpush1.bf16.msra.mxu0 0
        %524 = vmatprep.subr.bf16.mxu0 0
        %525 = vmatpush1.bf16.msra.mxu0 0
        %526 = vmatprep.subr.bf16.mxu0 0
        %527 = vmatpush1.bf16.msra.mxu0 0
        %528 = vmatprep.subr.bf16.mxu0 0
        %529 = vmatpush1.bf16.msra.mxu0 0
        %530 = vmatprep.subr.bf16.mxu0 0
        %531 = vmatpush1.bf16.msra.mxu0 0
        %532 = vmatprep.subr.bf16.mxu0 0
        %533 = vmatpush1.bf16.msra.mxu0 %v514
        %534 = vmatprep.subr.bf16.mxu0 0
        %535 = vmatpush1.bf16.msra.mxu0 %v513
        %536 = vmatprep.subr.bf16.mxu0 0
        %537 = vmatpush2.bf16.msra.mxu0 0
        %538 = vmatprep.subr.bf16.mxu0 0
        %539 = vmatpush2.bf16.msra.mxu0 0
        %540 = vmatprep.subr.bf16.mxu0 0
        %541 = vmatpush2.bf16.msra.mxu0 0
        %542 = vmatprep.subr.bf16.mxu0 0
        %543 = vmatpush2.bf16.msra.mxu0 0
        %544 = vmatprep.subr.bf16.mxu0 0
        %545 = vmatpush2.bf16.msra.mxu0 0
        %546 = vmatprep.subr.bf16.mxu0 0
        %547 = vmatpush2.bf16.msra.mxu0 0
        %548 = vmatprep.subr.bf16.mxu0 0
        %549 = vmatpush2.bf16.msra.mxu0 0
        %550 = vmatprep.subr.bf16.mxu0 0
        %551 = vmatpush2.bf16.msra.mxu0 0
        %552 = vmatprep.mubr.bf16.mxu0 0
        %553 = vmatmul.mubr.bf16.gmra.mxu0 %v518
        %v554 = vpop.f32.mrf.mxu0
        %v555 = vadd.f32 0.0, %v554
        %v556 = vpop.f32.mrf.mxu0
        %v557 = vpop.f32.mrf.mxu0
        %v558 = vpop.f32.mrf.mxu0
        %559 = vdwg.mxu0
        %v560 = vadd.f32 %v494, %v555
        %s561 = scalar_lea.vmem [#allocation2], 48
        %v562 = vld [vmem:[%s561] sm:$0xf]
        %v563 = vld [vmem:[%s561 + $0x4] sm:$0xf]
        %v564 = vld [vmem:[%s561 + $0x8] sm:$0xf]
        %v565 = vld [vmem:[%s561 + $0xc] sm:$0xf]
        %v566 = vrot.slane %v382, 1
        %v567 = vrot.slane %v384, 2
        %v568 = vor.u32 %v566, %v567
        %v573 = vunpack.c.l.b16 %v562
        %v574 = vunpack.c.l.b16 %v563
        %v575 = vunpack.c.l.b16 %v564
        %v576 = vunpack.c.l.b16 %v565
        %v577 = vpack.c.b16 %v574, %v573
        %v578 = vpack.c.b16 %v576, %v575
        %v582 = vsel %vm400, %v568, 0
        %584 = vmatprep.subr.bf16.mxu0 0
        %585 = vmatpush1.bf16.msra.mxu0 0
        %586 = vmatprep.subr.bf16.mxu0 0
        %587 = vmatpush1.bf16.msra.mxu0 0
        %588 = vmatprep.subr.bf16.mxu0 0
        %589 = vmatpush1.bf16.msra.mxu0 0
        %590 = vmatprep.subr.bf16.mxu0 0
        %591 = vmatpush1.bf16.msra.mxu0 0
        %592 = vmatprep.subr.bf16.mxu0 0
        %593 = vmatpush1.bf16.msra.mxu0 0
        %594 = vmatprep.subr.bf16.mxu0 0
        %595 = vmatpush1.bf16.msra.mxu0 0
        %596 = vmatprep.subr.bf16.mxu0 0
        %597 = vmatpush1.bf16.msra.mxu0 %v578
        %598 = vmatprep.subr.bf16.mxu0 0
        %599 = vmatpush1.bf16.msra.mxu0 %v577
        %600 = vmatprep.subr.bf16.mxu0 0
        %601 = vmatpush2.bf16.msra.mxu0 0
        %602 = vmatprep.subr.bf16.mxu0 0
        %603 = vmatpush2.bf16.msra.mxu0 0
        %604 = vmatprep.subr.bf16.mxu0 0
        %605 = vmatpush2.bf16.msra.mxu0 0
        %606 = vmatprep.subr.bf16.mxu0 0
        %607 = vmatpush2.bf16.msra.mxu0 0
        %608 = vmatprep.subr.bf16.mxu0 0
        %609 = vmatpush2.bf16.msra.mxu0 0
        %610 = vmatprep.subr.bf16.mxu0 0
        %611 = vmatpush2.bf16.msra.mxu0 0
        %612 = vmatprep.subr.bf16.mxu0 0
        %613 = vmatpush2.bf16.msra.mxu0 0
        %614 = vmatprep.subr.bf16.mxu0 0
        %615 = vmatpush2.bf16.msra.mxu0 0
        %616 = vmatprep.mubr.bf16.mxu0 0
        %617 = vmatmul.mubr.bf16.gmra.mxu0 %v582
        %v618 = vpop.f32.mrf.mxu0
        %v619 = vadd.f32 0.0, %v618
        %v620 = vpop.f32.mrf.mxu0
        %v621 = vpop.f32.mrf.mxu0
        %v622 = vpop.f32.mrf.mxu0
        %623 = vdwg.mxu0
        %v624 = vadd.f32 %v560, %v619
        %s625 = scalar_lea.vmem [#allocation2], 64
        %v626 = vld [vmem:[%s625] sm:$0xf]
        %v627 = vld [vmem:[%s625 + $0x4] sm:$0xf]
        %v628 = vld [vmem:[%s625 + $0x8] sm:$0xf]
        %v629 = vld [vmem:[%s625 + $0xc] sm:$0xf]
        %v630 = vrot.slane %v380, 2
        %v635 = vunpack.c.l.b16 %v626
        %v636 = vunpack.c.l.b16 %v627
        %v637 = vunpack.c.l.b16 %v628
        %v638 = vunpack.c.l.b16 %v629
        %v639 = vpack.c.b16 %v636, %v635
        %v640 = vpack.c.b16 %v638, %v637
        %v644 = vsel %vm400, %v630, 0
        %646 = vmatprep.subr.bf16.mxu0 0
        %647 = vmatpush1.bf16.msra.mxu0 0
        %648 = vmatprep.subr.bf16.mxu0 0
        %649 = vmatpush1.bf16.msra.mxu0 0
        %650 = vmatprep.subr.bf16.mxu0 0
        %651 = vmatpush1.bf16.msra.mxu0 0
        %652 = vmatprep.subr.bf16.mxu0 0
        %653 = vmatpush1.bf16.msra.mxu0 0
        %654 = vmatprep.subr.bf16.mxu0 0
        %655 = vmatpush1.bf16.msra.mxu0 0
        %656 = vmatprep.subr.bf16.mxu0 0
        %657 = vmatpush1.bf16.msra.mxu0 0
        %658 = vmatprep.subr.bf16.mxu0 0
        %659 = vmatpush1.bf16.msra.mxu0 %v640
        %660 = vmatprep.subr.bf16.mxu0 0
        %661 = vmatpush1.bf16.msra.mxu0 %v639
        %662 = vmatprep.subr.bf16.mxu0 0
        %663 = vmatpush2.bf16.msra.mxu0 0
        %664 = vmatprep.subr.bf16.mxu0 0
        %665 = vmatpush2.bf16.msra.mxu0 0
        %666 = vmatprep.subr.bf16.mxu0 0
        %667 = vmatpush2.bf16.msra.mxu0 0
        %668 = vmatprep.subr.bf16.mxu0 0
        %669 = vmatpush2.bf16.msra.mxu0 0
        %670 = vmatprep.subr.bf16.mxu0 0
        %671 = vmatpush2.bf16.msra.mxu0 0
        %672 = vmatprep.subr.bf16.mxu0 0
        %673 = vmatpush2.bf16.msra.mxu0 0
        %674 = vmatprep.subr.bf16.mxu0 0
        %675 = vmatpush2.bf16.msra.mxu0 0
        %676 = vmatprep.subr.bf16.mxu0 0
        %677 = vmatpush2.bf16.msra.mxu0 0
        %678 = vmatprep.mubr.bf16.mxu0 0
        %679 = vmatmul.mubr.bf16.gmra.mxu0 %v644
        %v680 = vpop.f32.mrf.mxu0
        %v681 = vadd.f32 0.0, %v680
        %v682 = vpop.f32.mrf.mxu0
        %v683 = vpop.f32.mrf.mxu0
        %v684 = vpop.f32.mrf.mxu0
        %685 = vdwg.mxu0
        %v686 = vadd.f32 %v624, %v681
        %v687 = vld [vmem:[%s3] sm:$0x1]
        %v689 = vlaneseq
        %v690 = vshrl.u32 %v689, 7
        %v691 = vsub.s32 0, %v690
        %v692 = vrot.slane %v687, %v691
        %v694 = vadd.f32 %v686, %v692
        %v695 = vmax.f32 %v694, 0.0
        %v696 = vld [vmem:[%s363] sm:$0xff]
        %698 = vset.pattern.permute.xlu0 0
        %699 = vperm.xlu0 %698, %v696
        %v700 = vpop.permute.xlu0 %699
        %v702 = vmul.f32 %v695, %v700
        %v703 = vrot.slane %v702, 4
        %v704 = vadd.f32 %v702, %v703
        %v705 = vrot.slane %v704, 2
        %v706 = vadd.f32 %v704, %v705
        %v707 = vrot.slane %v706, 1
        %v708 = vadd.f32 %v706, %v707
        %vm709 = vcmask 7168
        %v710 = vsel %vm709, %v696, 0.0
        %v711 = vrot.slane %v710, 4
        %v712 = vadd.f32 %v710, %v711
        %v713 = vrot.slane %v712, 2
        %v714 = vadd.f32 %v712, %v713
        %v715 = vrot.slane %v714, 1
        %v716 = vadd.f32 %v714, %v715
        %v717 = vpack.c.bf16 %v708, %v708
        %v718 = vld [vmem:[#allocation5] sm:$0xf]
        %v719 = vld [vmem:[#allocation5 + $0x4] sm:$0xf]
        %v720 = vld [vmem:[#allocation5 + $0x8] sm:$0xf]
        %v721 = vld [vmem:[#allocation5 + $0xc] sm:$0xf]
        %v722 = vld [vmem:[#allocation5 + $0x10] sm:$0xf]
        %v723 = vld [vmem:[#allocation5 + $0x14] sm:$0xf]
        %v724 = vld [vmem:[#allocation5 + $0x18] sm:$0xf]
        %v725 = vld [vmem:[#allocation5 + $0x1c] sm:$0xf]
        %v726 = vld [vmem:[#allocation5 + $0x20] sm:$0xf]
        %v727 = vld [vmem:[#allocation5 + $0x24] sm:$0xf]
        %v728 = vld [vmem:[#allocation5 + $0x28] sm:$0xf]
        %v729 = vld [vmem:[#allocation5 + $0x2c] sm:$0xf]
        %v730 = vld [vmem:[#allocation5 + $0x30] sm:$0xf]
        %v731 = vld [vmem:[#allocation5 + $0x34] sm:$0xf]
        %v732 = vld [vmem:[#allocation5 + $0x38] sm:$0xf]
        %v733 = vld [vmem:[#allocation5 + $0x3c] sm:$0xf]
        %v734 = vld [vmem:[%s5] sm:$0x1]
        %736 = vset.pattern.permute.xlu0 0
        %737 = vperm.xlu0 %736, %v716
        %v738 = vpop.permute.xlu0 %737
        %v740 = vmul.f32 %v734, %v738
        %v757 = vunpack.c.l.b16 %v718
        %v758 = vunpack.c.l.b16 %v719
        %v759 = vunpack.c.l.b16 %v720
        %v760 = vunpack.c.l.b16 %v721
        %v761 = vunpack.c.l.b16 %v722
        %v762 = vunpack.c.l.b16 %v723
        %v763 = vunpack.c.l.b16 %v724
        %v764 = vunpack.c.l.b16 %v725
        %v765 = vunpack.c.l.b16 %v726
        %v766 = vunpack.c.l.b16 %v727
        %v767 = vunpack.c.l.b16 %v728
        %v768 = vunpack.c.l.b16 %v729
        %v769 = vunpack.c.l.b16 %v730
        %v770 = vunpack.c.l.b16 %v731
        %v771 = vunpack.c.l.b16 %v732
        %v772 = vunpack.c.l.b16 %v733
        %v773 = vpack.c.b16 %v758, %v757
        %v774 = vpack.c.b16 %v760, %v759
        %v775 = vpack.c.b16 %v762, %v761
        %v776 = vpack.c.b16 %v764, %v763
        %v777 = vpack.c.b16 %v766, %v765
        %v778 = vpack.c.b16 %v768, %v767
        %v779 = vpack.c.b16 %v770, %v769
        %v780 = vpack.c.b16 %v772, %v771
        %789 = vmatprep.subr.bf16.mxu0 0
        %790 = vmatpush1.bf16.msra.mxu0 %v780
        %791 = vmatprep.subr.bf16.mxu0 0
        %792 = vmatpush1.bf16.msra.mxu0 %v779
        %793 = vmatprep.subr.bf16.mxu0 0
        %794 = vmatpush1.bf16.msra.mxu0 %v778
        %795 = vmatprep.subr.bf16.mxu0 0
        %796 = vmatpush1.bf16.msra.mxu0 %v777
        %797 = vmatprep.subr.bf16.mxu0 0
        %798 = vmatpush1.bf16.msra.mxu0 %v776
        %799 = vmatprep.subr.bf16.mxu0 0
        %800 = vmatpush1.bf16.msra.mxu0 %v775
        %801 = vmatprep.subr.bf16.mxu0 0
        %802 = vmatpush1.bf16.msra.mxu0 %v774
        %803 = vmatprep.subr.bf16.mxu0 0
        %804 = vmatpush1.bf16.msra.mxu0 %v773
        %805 = vmatprep.subr.bf16.mxu0 0
        %806 = vmatpush2.bf16.msra.mxu0 0
        %807 = vmatprep.subr.bf16.mxu0 0
        %808 = vmatpush2.bf16.msra.mxu0 0
        %809 = vmatprep.subr.bf16.mxu0 0
        %810 = vmatpush2.bf16.msra.mxu0 0
        %811 = vmatprep.subr.bf16.mxu0 0
        %812 = vmatpush2.bf16.msra.mxu0 0
        %813 = vmatprep.subr.bf16.mxu0 0
        %814 = vmatpush2.bf16.msra.mxu0 0
        %815 = vmatprep.subr.bf16.mxu0 0
        %816 = vmatpush2.bf16.msra.mxu0 0
        %817 = vmatprep.subr.bf16.mxu0 0
        %818 = vmatpush2.bf16.msra.mxu0 0
        %819 = vmatprep.subr.bf16.mxu0 0
        %820 = vmatpush2.bf16.msra.mxu0 0
        %821 = vmatprep.mubr.bf16.mxu0 0
        %822 = vmatmul.mubr.bf16.gmra.mxu0 %v717
        %v823 = vpop.f32.mrf.mxu0
        %v824 = vadd.f32 %v740, %v823
        %v825 = vpop.f32.mrf.mxu0
        %v826 = vpop.f32.mrf.mxu0
        %v827 = vpop.f32.mrf.mxu0
        %828 = vdwg.mxu0
        %v829 = vpack.c.bf16 %v824, %v824
        %v830 = vld [vmem:[#allocation7] sm:$0xf]
        %v831 = vld [vmem:[#allocation7 + $0x4] sm:$0xf]
        %v832 = vld [vmem:[#allocation7 + $0x8] sm:$0xf]
        %v833 = vld [vmem:[#allocation7 + $0xc] sm:$0xf]
        %v834 = vld [vmem:[#allocation7 + $0x10] sm:$0xf]
        %v835 = vld [vmem:[#allocation7 + $0x14] sm:$0xf]
        %v836 = vld [vmem:[#allocation7 + $0x18] sm:$0xf]
        %v837 = vld [vmem:[#allocation7 + $0x1c] sm:$0xf]
        %v838 = vld [vmem:[#allocation7 + $0x20] sm:$0xf]
        %v839 = vld [vmem:[#allocation7 + $0x24] sm:$0xf]
        %v840 = vld [vmem:[#allocation7 + $0x28] sm:$0xf]
        %v841 = vld [vmem:[#allocation7 + $0x2c] sm:$0xf]
        %v842 = vld [vmem:[#allocation7 + $0x30] sm:$0xf]
        %v843 = vld [vmem:[#allocation7 + $0x34] sm:$0xf]
        %v844 = vld [vmem:[#allocation7 + $0x38] sm:$0xf]
        %v845 = vld [vmem:[#allocation7 + $0x3c] sm:$0xf]
        %v846 = vld [vmem:[%s7] sm:$0x1]
        %v863 = vunpack.c.l.b16 %v830
        %v864 = vunpack.c.l.b16 %v831
        %v865 = vunpack.c.l.b16 %v832
        %v866 = vunpack.c.l.b16 %v833
        %v867 = vunpack.c.l.b16 %v834
        %v868 = vunpack.c.l.b16 %v835
        %v869 = vunpack.c.l.b16 %v836
        %v870 = vunpack.c.l.b16 %v837
        %v871 = vunpack.c.l.b16 %v838
        %v872 = vunpack.c.l.b16 %v839
        %v873 = vunpack.c.l.b16 %v840
        %v874 = vunpack.c.l.b16 %v841
        %v875 = vunpack.c.l.b16 %v842
        %v876 = vunpack.c.l.b16 %v843
        %v877 = vunpack.c.l.b16 %v844
        %v878 = vunpack.c.l.b16 %v845
        %v879 = vpack.c.b16 %v864, %v863
        %v880 = vpack.c.b16 %v866, %v865
        %v881 = vpack.c.b16 %v868, %v867
        %v882 = vpack.c.b16 %v870, %v869
        %v883 = vpack.c.b16 %v872, %v871
        %v884 = vpack.c.b16 %v874, %v873
        %v885 = vpack.c.b16 %v876, %v875
        %v886 = vpack.c.b16 %v878, %v877
        %895 = vmatprep.subr.bf16.mxu0 0
        %896 = vmatpush1.bf16.msra.mxu0 %v886
        %897 = vmatprep.subr.bf16.mxu0 0
        %898 = vmatpush1.bf16.msra.mxu0 %v885
        %899 = vmatprep.subr.bf16.mxu0 0
        %900 = vmatpush1.bf16.msra.mxu0 %v884
        %901 = vmatprep.subr.bf16.mxu0 0
        %902 = vmatpush1.bf16.msra.mxu0 %v883
        %903 = vmatprep.subr.bf16.mxu0 0
        %904 = vmatpush1.bf16.msra.mxu0 %v882
        %905 = vmatprep.subr.bf16.mxu0 0
        %906 = vmatpush1.bf16.msra.mxu0 %v881
        %907 = vmatprep.subr.bf16.mxu0 0
        %908 = vmatpush1.bf16.msra.mxu0 %v880
        %909 = vmatprep.subr.bf16.mxu0 0
        %910 = vmatpush1.bf16.msra.mxu0 %v879
        %911 = vmatprep.subr.bf16.mxu0 0
        %912 = vmatpush2.bf16.msra.mxu0 0
        %913 = vmatprep.subr.bf16.mxu0 0
        %914 = vmatpush2.bf16.msra.mxu0 0
        %915 = vmatprep.subr.bf16.mxu0 0
        %916 = vmatpush2.bf16.msra.mxu0 0
        %917 = vmatprep.subr.bf16.mxu0 0
        %918 = vmatpush2.bf16.msra.mxu0 0
        %919 = vmatprep.subr.bf16.mxu0 0
        %920 = vmatpush2.bf16.msra.mxu0 0
        %921 = vmatprep.subr.bf16.mxu0 0
        %922 = vmatpush2.bf16.msra.mxu0 0
        %923 = vmatprep.subr.bf16.mxu0 0
        %924 = vmatpush2.bf16.msra.mxu0 0
        %925 = vmatprep.subr.bf16.mxu0 0
        %926 = vmatpush2.bf16.msra.mxu0 0
        %927 = vmatprep.mubr.bf16.mxu0 0
        %928 = vmatmul.mubr.bf16.gmra.mxu0 %v829
        %v929 = vpop.f32.mrf.mxu0
        %v930 = vadd.f32 %v846, %v929
        %v931 = vpop.f32.mrf.mxu0
        %v932 = vpop.f32.mrf.mxu0
        %v933 = vpop.f32.mrf.mxu0
        %934 = vdwg.mxu0
        %935 = vst [vmem:[%s354] sm:$0x1] %v930
        %s936 = sand.u32 %s210, 1
        %s937 = scalar_lea.sflag [#allocation4], %s936
        %s938 = sand.u32 %s210, 1
        %s939 = scalar_lea.vmem [#allocation8], %s938
        // Predicated region
        $region65: #{tpu_custom_call.1} parent=51 // pred_check
          %p940 = pneg %p220
        $region66: #{tpu_custom_call.1} parent=51 // pred_check_branch
          %942 = sbr.rel (%p940) target = $region68
        $region67: #{tpu_custom_call.1} parent=51 // pred_region
          %s944 = ssub.s32 16, 16
          %945 = vsyncadd %s937, %s944
          %s946 = smul.addr %s24, 16
          %s947 = scalar_lea.hbm %s8, %s946
          %s949 = sshll.u32 %s939, 4
          %s950 = int_to_ptr.vmem [resolvable:$true] %s949
          %952 = dma.vmem_to_hbm [thread:$0]  %s950, 16, %s947, %s937
        $region68: #{tpu_custom_call.1} parent=51 // pred_fallthru
          _
      $region52: #{tpu_custom_call.1} parent=5 // pred_fallthru
        _
      %p953 = scmp.le.s32.totalorder 2, %s19
      // Predicated region
      $region69: #{tpu_custom_call.1} parent=5 // pred_check
        %p954 = pneg %p953
      $region70: #{tpu_custom_call.1} parent=5 // pred_check_branch
        %956 = sbr.rel (%p954) target = $region72
      $region71: #{tpu_custom_call.1} parent=5 // pred_region
        %s957 = ssub.s32 %s19, 2
        // Predicated region
        $region73: #{tpu_custom_call.1} parent=71 // pred_check
          %p958 = pneg %p226
        $region74: #{tpu_custom_call.1} parent=71 // pred_check_branch
          %960 = sbr.rel (%p958) target = $region76
        $region75: #{tpu_custom_call.1} parent=71 // pred_region
          %s961 = sand.u32 %s211, 1
          %s962 = scalar_lea.sflag [#allocation4], %s961
          %s963 = sand.u32 %s211, 1
          %s964 = scalar_lea.vmem [#allocation8], %s963
          %965 = dma.done %s962, 16
        $region76: #{tpu_custom_call.1} parent=71 // pred_fallthru
          _
      $region72: #{tpu_custom_call.1} parent=5 // pred_fallthru
        _
    $region6: #{tpu_custom_call.1} parent=1 // loop_footer
      %s23 = sadd.s32 1, %s19
    $region7: #{tpu_custom_call.1} parent=1 // loop_footer_branch
      %18 = sbr.rel target = $region3
    $region8: #{tpu_custom_call.1} parent=1 // loop_exit
      _
    %966 = vsyncpa [#allocation3], 1
    %s967 = scalar_lea.sflag [#allocation3], 1
    %968 = vsyncpa %s967, 1
    %969 = vsyncpa [#allocation6], 1
    %970 = vsyncpa [#allocation4], 1
    %s971 = scalar_lea.sflag [#allocation4], 1
    %972 = vsyncpa %s971, 1

</llo_original>
